<compile_context>
chip_gen: v7x
topology: tpu7x:2x2x1
jax: 0.10.0
libtpu: 0.0.40
codegen_flags: <defaults>
</compile_context>

<pallas_src>
import jax
import jax.numpy as jnp
import numpy as np
from jax.experimental import pallas as pl
from jax.experimental.pallas import tpu as pltpu

HIDDEN = 64                  # hidden_dim (module default)
C2 = 2 * HIDDEN              # conv2 / fc1 input channels
B = 8                        # batch
L = 96                       # sequence length (divisible by 3 for MaxPool1d(3))
LP = L // 3                  # pooled length
NBL = B * LP                 # pooled rows, position-major (row = p*B + b)
NROWS = B * L                # pre-pool rows, position-major (row = l*B + b)
K1 = 6                       # conv1 kernel ('same': pad 2 left / 3 right)
K2 = 3                       # conv2 kernel ('same': pad 1 / 1)
PADROWS = (L + K1 - 1) * B   # 808 rows incl. conv1 'same' padding

# Row indices inside the packed (16, 128) f32 per-channel parameter block.
_W1_ROW = 0      # rows 0..5: conv1 weight taps w1[j, :HIDDEN]
_B1_ROW = 6      # conv1 bias
_S1_ROW = 7      # BN1 scale (eval, running stats folded)
_T1_ROW = 8      # BN1 shift
_B2_ROW = 9      # conv2 bias (full 128 lanes)
_FC1B_ROW = 10   # fc1 bias with BN2 shift folded in
_FC2W_ROW = 11   # fc2 weight row with BN3 scale folded in
_FC2B_ROW = 12   # lane 0: fc2 bias with BN3 shift folded in


def deephage_kernel(xpm_ref, vecs_ref, w2_ref, fc1w_ref, out_ref):
    f32 = jnp.float32
    vecs = vecs_ref[...]                                           # (16, 128) f32

    # ---- conv1 (k=6, 'same') on the VPU -------------------------------------
    # xpm rows are position-major (row = (l + 2)*B + b) with the conv1 'same'
    # zero padding built in and the scalar broadcast across the HIDDEN lanes,
    # so tap j is simply the aligned row window [j*B, j*B + L*B).
    acc1 = xpm_ref[0:NROWS, :] * vecs[_W1_ROW:_W1_ROW + 1, 0:HIDDEN]
    for j in range(1, K1):
        acc1 = acc1 + (xpm_ref[j * B:j * B + NROWS, :] *
                       vecs[_W1_ROW + j:_W1_ROW + j + 1, 0:HIDDEN])
    pre = acc1 + vecs[_B1_ROW:_B1_ROW + 1, 0:HIDDEN]               # (768, 64)

    # ---- ReLU + MaxPool1d(3) + BN1 (eval) ------------------------------------
    # row = l*B + b = 24*p + 8*r + b  ->  each pooling phase r is an aligned
    # 8-row tile of every 24-row group.  (relu/max commute, relu applied after.)
    pre3 = pre.reshape(LP, 3 * B, HIDDEN)
    pooled = jnp.maximum(jnp.maximum(pre3[:, 0:B, :], pre3[:, B:2 * B, :]),
                         pre3[:, 2 * B:3 * B, :]).reshape(NBL, HIDDEN)
    h1 = jnp.maximum(pooled, 0.0)
    h1 = (h1 * vecs[_S1_ROW:_S1_ROW + 1, 0:HIDDEN]
          + vecs[_T1_ROW:_T1_ROW + 1, 0:HIDDEN])
    # dropout1 = identity (inference)

    # ---- conv2 (k=3, 'same') as ONE fused (256,192)x(192,128) bf16 MXU dot ---
    # +/-1 position shift == +/-B rows == one aligned f32 sublane tile; the
    # inserted zero block is exactly the 'same' padding (batch is the fastest
    # row index, so there is no cross-batch contamination).  Taps are built in
    # f32 (aligned shifts), lane-concatenated once, then cast to bf16 for the MXU.
    zblk = jnp.zeros((B, HIDDEN), f32)
    h_prev = jnp.concatenate([zblk, h1[:NBL - B, :]], axis=0)      # tap j=0 (p-1)
    h_next = jnp.concatenate([h1[B:, :], zblk], axis=0)            # tap j=2 (p+1)
    taps = jnp.concatenate([h_prev, h1, h_next], axis=1).astype(jnp.bfloat16)
    acc2 = jnp.dot(taps, w2_ref[...], preferred_element_type=f32)  # (256, 128) f32
    y2 = jnp.maximum(acc2 + vecs[_B2_ROW:_B2_ROW + 1, :], 0.0)
    # BN2 folded into fc1 (prepare_params); dropout2 = identity

    # ---- AdaptiveAvgPool1d(1): sum of the 32 aligned (8,128) position tiles ---
    feat = jnp.sum(y2.reshape(LP, B, C2), axis=0) * (1.0 / LP)     # (8, 128)

    # ---- fc1 (BN2 folded) -> ReLU -> fc2 (BN3 folded, VPU) -> sigmoid ---------
    z = jnp.dot(feat, fc1w_ref[...], preferred_element_type=f32)   # (8, 64)
    z = jnp.maximum(z + vecs[_FC1B_ROW:_FC1B_ROW + 1, 0:HIDDEN], 0.0)
    # dropout3 = identity
    logit = (jnp.sum(z * vecs[_FC2W_ROW:_FC2W_ROW + 1, 0:HIDDEN],
                     axis=-1, keepdims=True)
             + vecs[_FC2B_ROW:_FC2B_ROW + 1, 0:1])                 # (8, 1)
    out_ref[...] = 1.0 / (1.0 + jnp.exp(-logit))                   # sigmoid


@jax.jit
def deephage_forward(x, prep):
    """x: (B, L, 1) float32 — same layout the PyTorch module receives."""
    b_, l_, c_ = x.shape
    assert b_ == B and l_ == L and c_ == 1
    # The ONLY per-call glue: one transpose+pad+broadcast fusion producing the
    # position-major, 'same'-padded, lane-broadcast conv1 input (~200 KB).
    xflat = jnp.transpose(x[:, :, 0]).reshape(L * B)               # row = l*B + b
    xpad = jnp.pad(xflat, (2 * B, 3 * B))                          # conv1 'same' (2,3)
    xpm = jnp.broadcast_to(xpad[:, None], (PADROWS, HIDDEN))       # (808, 64)

    return pl.pallas_call(
        deephage_kernel,
        out_shape=jax.ShapeDtypeStruct((B, 1), jnp.float32),
        in_specs=[pl.BlockSpec(memory_space=pltpu.MemorySpace.VMEM)] * 4,
        out_specs=pl.BlockSpec(memory_space=pltpu.MemorySpace.VMEM),
    )(xpm, prep['vecs'], prep['w2t'], prep['fc1wp'])


def prepare_params(P):
    """One-time, off the per-call path: BN folds, weight reshapes, vector packing."""
    f32 = jnp.float32
    vecs = jnp.zeros((16, 128), f32)
    vecs = vecs.at[_W1_ROW:_W1_ROW + K1, 0:HIDDEN].set(P['w1'])          # (6, 64)
    vecs = vecs.at[_B1_ROW, 0:HIDDEN].set(P['b1'][0])
    vecs = vecs.at[_S1_ROW, 0:HIDDEN].set(P['s1'][0])
    vecs = vecs.at[_T1_ROW, 0:HIDDEN].set(P['t1'][0])
    vecs = vecs.at[_B2_ROW, 0:C2].set(P['b2'][0])
    fc1b_f = P['fc1b'][0] + P['t2'][0] @ P['fc1w']                       # BN2 shift fold
    vecs = vecs.at[_FC1B_ROW, 0:HIDDEN].set(fc1b_f)
    fc2w_f = P['s3'][0] * P['fc2w'][:, 0]                                # BN3 scale fold
    vecs = vecs.at[_FC2W_ROW, 0:HIDDEN].set(fc2w_f)
    fc2b_f = P['fc2b'][0, 0] + P['t3'][0] @ P['fc2w'][:, 0]              # BN3 shift fold
    vecs = vecs.at[_FC2B_ROW, 0].set(fc2b_f)

    w2t = P['w2'].reshape(K2 * HIDDEN, C2).astype(jnp.bfloat16)          # (192, 128)
    fc1wp = (P['s2'][0][:, None] * P['fc1w']).astype(f32)                # BN2 scale fold
    return dict(vecs=vecs, w2t=w2t, fc1wp=fc1wp)


def init_params(key, hidden=HIDDEN):
    c2 = 2 * hidden
    ks = jax.random.split(key, 14)
    eps = 1e-5

    conv1_w = jax.random.normal(ks[0], (hidden, 1, K1), jnp.float32) * 0.3
    conv1_b = jax.random.normal(ks[1], (hidden,), jnp.float32) * 0.1
    conv2_w = jax.random.normal(ks[2], (c2, hidden, K2), jnp.float32) * (0.3 / np.sqrt(hidden))
    conv2_b = jax.random.normal(ks[3], (c2,), jnp.float32) * 0.1
    fc1_w = jax.random.normal(ks[4], (hidden, c2), jnp.float32) * (1.0 / np.sqrt(c2))
    fc1_b = jax.random.normal(ks[5], (hidden,), jnp.float32) * 0.1
    fc2_w = jax.random.normal(ks[6], (1, hidden), jnp.float32) * (1.0 / np.sqrt(hidden))
    fc2_b = jax.random.normal(ks[7], (1,), jnp.float32) * 0.1

    g1 = 1.0 + 0.1 * jax.random.normal(ks[8], (hidden,), jnp.float32)
    be1 = 0.1 * jax.random.normal(ks[9], (hidden,), jnp.float32)
    g2 = 1.0 + 0.1 * jax.random.normal(ks[10], (c2,), jnp.float32)
    be2 = 0.1 * jax.random.normal(ks[11], (c2,), jnp.float32)
    g3 = 1.0 + 0.1 * jax.random.normal(ks[12], (hidden,), jnp.float32)
    be3 = 0.1 * jax.random.normal(ks[13], (hidden,), jnp.float32)

    run_mean, run_var = 0.0, 1.0                 # freshly-initialized running stats

    def fold(g, be):
        s = g / jnp.sqrt(run_var + eps)
        t = be - run_mean * s
        return s.reshape(1, -1), t.reshape(1, -1)

    s1, t1 = fold(g1, be1)
    s2, t2 = fold(g2, be2)
    s3, t3 = fold(g3, be3)

    return dict(
        w1=conv1_w[:, 0, :].T,                   # (K1, H):  w1[j, h] = conv1_w[h, 0, j]
        b1=conv1_b.reshape(1, hidden),
        s1=s1, t1=t1,
        w2=jnp.transpose(conv2_w, (2, 1, 0)),    # (K2, H, C2)
        b2=conv2_b.reshape(1, c2),
        s2=s2, t2=t2,
        fc1w=fc1_w.T, fc1b=fc1_b.reshape(1, hidden),
        s3=s3, t3=t3,
        fc2w=fc2_w.T, fc2b=fc2_b.reshape(1, 1),
    )


def reference_forward(x, P):
    """Pure-JAX f32 reference of the PyTorch forward (inference semantics)."""
    PH = jax.lax.Precision.HIGHEST
    b_, l_, _ = x.shape
    lp = l_ // 3
    xc = x[:, :, 0]
    xp = jnp.pad(xc, ((0, 0), (2, 3)))                                   # conv1 'same'
    cols = jnp.stack([xp[:, j:j + l_] for j in range(K1)], axis=-1)      # (B, L, K1)
    h = jnp.einsum('blj,jh->blh', cols, P['w1'], precision=PH) + P['b1']
    h = jax.nn.relu(h)
    h = jnp.max(h[:, :lp * 3, :].reshape(b_, lp, 3, -1), axis=2)          # MaxPool1d(3)
    h = h * P['s1'] + P['t1']                                             # BN1 (eval)
    hp = jnp.pad(h, ((0, 0), (1, 1), (0, 0)))                             # conv2 'same'
    cols2 = jnp.stack([hp[:, j:j + lp, :] for j in range(K2)], axis=2)    # (B, LP, K2, H)
    y = jnp.einsum('bljh,jhc->blc', cols2, P['w2'], precision=PH) + P['b2']
    y = jax.nn.relu(y)
    y = y * P['s2'] + P['t2']                                             # BN2 (eval)
    f = jnp.mean(y, axis=1)                                               # AdaptiveAvgPool1d(1)
    z = jax.nn.relu(jnp.dot(f, P['fc1w'], precision=PH) + P['fc1b'])
    z = z * P['s3'] + P['t3']                                             # BN3 (eval)
    return jax.nn.sigmoid(jnp.dot(z, P['fc2w'], precision=PH) + P['fc2b'])


if __name__ == "__main__":
    key = jax.random.PRNGKey(0)
    pkey, xkey = jax.random.split(key)
    params = init_params(pkey)
    prep = prepare_params(params)                # one-time param prep (off per-call path)
    x = jax.random.normal(xkey, (B, L, 1), jnp.float32)   # module input: (batch, seq, 1)

    out = deephage_forward(x, prep)
    out = jax.block_until_ready(out)

    ref = reference_forward(x, params)
    assert out.shape == (B, 1) and out.dtype == jnp.float32
    # conv2 runs with bf16 MXU operands (f32 accumulation); observed error ~1e-4.
    np.testing.assert_allclose(np.asarray(out), np.asarray(ref), rtol=1e-3, atol=5e-3)
    print("KERNEL_OK")
</pallas_src>

<mosaic_0001>
module attributes {stable_mosaic.version = 11 : i64} {
  func.func @deephage_kernel(%arg0: memref<808x64xf32, #tpu.memory_space<vmem>>, %arg1: memref<16x128xf32, #tpu.memory_space<vmem>>, %arg2: memref<192x128xbf16, #tpu.memory_space<vmem>>, %arg3: memref<128x64xf32, #tpu.memory_space<vmem>>, %arg4: memref<8x1xf32, #tpu.memory_space<vmem>>) attributes {dimension_semantics = [], scalar_prefetch = 0 : i64, scratch_operands = 0 : i64, tpu.core_type = #tpu.core_type<tc>} {
    %c0 = arith.constant 0 : index
    %c0_0 = arith.constant 0 : index
    %0 = vector.load %arg1[%c0, %c0_0] : memref<16x128xf32, #tpu.memory_space<vmem>>, vector<16x128xf32>
    %c0_1 = arith.constant 0 : index
    %c0_2 = arith.constant 0 : index
    %1 = vector.load %arg0[%c0_1, %c0_2] : memref<808x64xf32, #tpu.memory_space<vmem>>, vector<768x64xf32>
    %2 = vector.extract_strided_slice %0 {offsets = [0, 0], sizes = [1, 64], strides = [1, 1]} : vector<16x128xf32> to vector<1x64xf32>
    %3 = vector.broadcast %2 : vector<1x64xf32> to vector<768x64xf32>
    %4 = arith.mulf %1, %3 : vector<768x64xf32>
    %c8 = arith.constant 8 : index
    %c0_3 = arith.constant 0 : index
    %5 = vector.load %arg0[%c8, %c0_3] : memref<808x64xf32, #tpu.memory_space<vmem>>, vector<768x64xf32>
    %6 = vector.extract_strided_slice %0 {offsets = [1, 0], sizes = [1, 64], strides = [1, 1]} : vector<16x128xf32> to vector<1x64xf32>
    %7 = vector.broadcast %6 : vector<1x64xf32> to vector<768x64xf32>
    %8 = arith.mulf %5, %7 : vector<768x64xf32>
    %9 = arith.addf %4, %8 : vector<768x64xf32>
    %c16 = arith.constant 16 : index
    %c0_4 = arith.constant 0 : index
    %10 = vector.load %arg0[%c16, %c0_4] : memref<808x64xf32, #tpu.memory_space<vmem>>, vector<768x64xf32>
    %11 = vector.extract_strided_slice %0 {offsets = [2, 0], sizes = [1, 64], strides = [1, 1]} : vector<16x128xf32> to vector<1x64xf32>
    %12 = vector.broadcast %11 : vector<1x64xf32> to vector<768x64xf32>
    %13 = arith.mulf %10, %12 : vector<768x64xf32>
    %14 = arith.addf %9, %13 : vector<768x64xf32>
    %c24 = arith.constant 24 : index
    %c0_5 = arith.constant 0 : index
    %15 = vector.load %arg0[%c24, %c0_5] : memref<808x64xf32, #tpu.memory_space<vmem>>, vector<768x64xf32>
    %16 = vector.extract_strided_slice %0 {offsets = [3, 0], sizes = [1, 64], strides = [1, 1]} : vector<16x128xf32> to vector<1x64xf32>
    %17 = vector.broadcast %16 : vector<1x64xf32> to vector<768x64xf32>
    %18 = arith.mulf %15, %17 : vector<768x64xf32>
    %19 = arith.addf %14, %18 : vector<768x64xf32>
    %c32 = arith.constant 32 : index
    %c0_6 = arith.constant 0 : index
    %20 = vector.load %arg0[%c32, %c0_6] : memref<808x64xf32, #tpu.memory_space<vmem>>, vector<768x64xf32>
    %21 = vector.extract_strided_slice %0 {offsets = [4, 0], sizes = [1, 64], strides = [1, 1]} : vector<16x128xf32> to vector<1x64xf32>
    %22 = vector.broadcast %21 : vector<1x64xf32> to vector<768x64xf32>
    %23 = arith.mulf %20, %22 : vector<768x64xf32>
    %24 = arith.addf %19, %23 : vector<768x64xf32>
    %c40 = arith.constant 40 : index
    %c0_7 = arith.constant 0 : index
    %25 = vector.load %arg0[%c40, %c0_7] : memref<808x64xf32, #tpu.memory_space<vmem>>, vector<768x64xf32>
    %26 = vector.extract_strided_slice %0 {offsets = [5, 0], sizes = [1, 64], strides = [1, 1]} : vector<16x128xf32> to vector<1x64xf32>
    %27 = vector.broadcast %26 : vector<1x64xf32> to vector<768x64xf32>
    %28 = arith.mulf %25, %27 : vector<768x64xf32>
    %29 = arith.addf %24, %28 : vector<768x64xf32>
    %30 = vector.extract_strided_slice %0 {offsets = [6, 0], sizes = [1, 64], strides = [1, 1]} : vector<16x128xf32> to vector<1x64xf32>
    %31 = vector.broadcast %30 : vector<1x64xf32> to vector<768x64xf32>
    %32 = arith.addf %29, %31 : vector<768x64xf32>
    %33 = vector.shape_cast %32 : vector<768x64xf32> to vector<32x24x64xf32>
    %34 = vector.extract_strided_slice %33 {offsets = [0, 0, 0], sizes = [32, 8, 64], strides = [1, 1, 1]} : vector<32x24x64xf32> to vector<32x8x64xf32>
    %35 = vector.extract_strided_slice %33 {offsets = [0, 8, 0], sizes = [32, 8, 64], strides = [1, 1, 1]} : vector<32x24x64xf32> to vector<32x8x64xf32>
    %36 = arith.maximumf %34, %35 : vector<32x8x64xf32>
    %37 = vector.extract_strided_slice %33 {offsets = [0, 16, 0], sizes = [32, 8, 64], strides = [1, 1, 1]} : vector<32x24x64xf32> to vector<32x8x64xf32>
    %38 = arith.maximumf %36, %37 : vector<32x8x64xf32>
    %39 = vector.shape_cast %38 : vector<32x8x64xf32> to vector<256x64xf32>
    %cst = arith.constant 0.000000e+00 : f32
    %40 = vector.broadcast %cst : f32 to vector<256x64xf32>
    %41 = arith.maximumf %39, %40 : vector<256x64xf32>
    %42 = vector.extract_strided_slice %0 {offsets = [7, 0], sizes = [1, 64], strides = [1, 1]} : vector<16x128xf32> to vector<1x64xf32>
    %43 = vector.broadcast %42 : vector<1x64xf32> to vector<256x64xf32>
    %44 = arith.mulf %41, %43 : vector<256x64xf32>
    %45 = vector.extract_strided_slice %0 {offsets = [8, 0], sizes = [1, 64], strides = [1, 1]} : vector<16x128xf32> to vector<1x64xf32>
    %46 = vector.broadcast %45 : vector<1x64xf32> to vector<256x64xf32>
    %47 = arith.addf %44, %46 : vector<256x64xf32>
    %cst_8 = arith.constant 0.000000e+00 : f32
    %48 = vector.broadcast %cst_8 : f32 to vector<8x64xf32>
    %49 = vector.extract_strided_slice %47 {offsets = [0, 0], sizes = [248, 64], strides = [1, 1]} : vector<256x64xf32> to vector<248x64xf32>
    %50 = tpu.concatenate %48, %49 in 0 : vector<8x64xf32>, vector<248x64xf32> -> vector<256x64xf32>
    %51 = vector.extract_strided_slice %47 {offsets = [8, 0], sizes = [248, 64], strides = [1, 1]} : vector<256x64xf32> to vector<248x64xf32>
    %52 = tpu.concatenate %51, %48 in 0 : vector<248x64xf32>, vector<8x64xf32> -> vector<256x64xf32>
    %53 = tpu.concatenate %50, %47, %52 in 1 : vector<256x64xf32>, vector<256x64xf32>, vector<256x64xf32> -> vector<256x192xf32>
    %54 = arith.truncf %53 : vector<256x192xf32> to vector<256x192xbf16>
    %c0_9 = arith.constant 0 : index
    %c0_10 = arith.constant 0 : index
    %55 = vector.load %arg2[%c0_9, %c0_10] : memref<192x128xbf16, #tpu.memory_space<vmem>>, vector<192x128xbf16>
    %cst_11 = arith.constant dense<0.000000e+00> : vector<256x128xf32>
    %56 = tpu.matmul %54, %55, %cst_11 {dimension_numbers = #tpu.dot_dimension_numbers<[1], [0], [0], [1], [0, 0, 1, 1], [], []>} : vector<256x192xbf16>, vector<192x128xbf16>, vector<256x128xf32> -> vector<256x128xf32>
    %57 = vector.extract_strided_slice %0 {offsets = [9, 0], sizes = [1, 128], strides = [1, 1]} : vector<16x128xf32> to vector<1x128xf32>
    %58 = vector.broadcast %57 : vector<1x128xf32> to vector<256x128xf32>
    %59 = arith.addf %56, %58 : vector<256x128xf32>
    %cst_12 = arith.constant 0.000000e+00 : f32
    %60 = vector.broadcast %cst_12 : f32 to vector<256x128xf32>
    %61 = arith.maximumf %59, %60 : vector<256x128xf32>
    %62 = vector.shape_cast %61 : vector<256x128xf32> to vector<32x8x128xf32>
    %cst_13 = arith.constant dense<0.000000e+00> : vector<8x128xf32>
    %63 = vector.multi_reduction <add>, %62, %cst_13 [0] : vector<32x8x128xf32> to vector<8x128xf32>
    %cst_14 = arith.constant 3.125000e-02 : f32
    %64 = vector.broadcast %cst_14 : f32 to vector<8x128xf32>
    %65 = arith.mulf %63, %64 : vector<8x128xf32>
    %c0_15 = arith.constant 0 : index
    %c0_16 = arith.constant 0 : index
    %66 = vector.load %arg3[%c0_15, %c0_16] : memref<128x64xf32, #tpu.memory_space<vmem>>, vector<128x64xf32>
    %cst_17 = arith.constant dense<0.000000e+00> : vector<8x64xf32>
    %67 = tpu.matmul %65, %66, %cst_17 {dimension_numbers = #tpu.dot_dimension_numbers<[1], [0], [0], [1], [0, 0, 1, 1], [], []>} : vector<8x128xf32>, vector<128x64xf32>, vector<8x64xf32> -> vector<8x64xf32>
    %68 = vector.extract_strided_slice %0 {offsets = [10, 0], sizes = [1, 64], strides = [1, 1]} : vector<16x128xf32> to vector<1x64xf32>
    %69 = vector.broadcast %68 : vector<1x64xf32> to vector<8x64xf32>
    %70 = arith.addf %67, %69 : vector<8x64xf32>
    %cst_18 = arith.constant 0.000000e+00 : f32
    %71 = vector.broadcast %cst_18 : f32 to vector<8x64xf32>
    %72 = arith.maximumf %70, %71 : vector<8x64xf32>
    %73 = vector.extract_strided_slice %0 {offsets = [11, 0], sizes = [1, 64], strides = [1, 1]} : vector<16x128xf32> to vector<1x64xf32>
    %74 = vector.broadcast %73 : vector<1x64xf32> to vector<8x64xf32>
    %75 = arith.mulf %72, %74 : vector<8x64xf32>
    %cst_19 = arith.constant dense<0.000000e+00> : vector<8xf32>
    %76 = vector.multi_reduction <add>, %75, %cst_19 [1] : vector<8x64xf32> to vector<8xf32>
    %77 = vector.shape_cast %76 : vector<8xf32> to vector<8x1xf32>
    %78 = vector.extract_strided_slice %0 {offsets = [12, 0], sizes = [1, 1], strides = [1, 1]} : vector<16x128xf32> to vector<1x1xf32>
    %79 = vector.broadcast %78 : vector<1x1xf32> to vector<8x1xf32>
    %80 = arith.addf %77, %79 : vector<8x1xf32>
    %cst_20 = arith.constant 0.000000e+00 : f32
    %81 = vector.broadcast %cst_20 : f32 to vector<8x1xf32>
    %82 = arith.subf %81, %80 : vector<8x1xf32>
    %83 = math.exp %82 : vector<8x1xf32>
    %cst_21 = arith.constant 1.000000e+00 : f32
    %84 = vector.broadcast %cst_21 : f32 to vector<8x1xf32>
    %85 = arith.addf %84, %83 : vector<8x1xf32>
    %cst_22 = arith.constant 1.000000e+00 : f32
    %86 = vector.broadcast %cst_22 : f32 to vector<8x1xf32>
    %87 = arith.divf %86, %85 : vector<8x1xf32>
    %c0_23 = arith.constant 0 : index
    %c0_24 = arith.constant 0 : index
    %88 = vector.load %arg4[%c0_23, %c0_24] : memref<8x1xf32, #tpu.memory_space<vmem>>, vector<8x1xf32>
    tpu.vector_store %arg4[%c0_23, %c0_24], %87 {strides = array<i32>} : memref<8x1xf32, #tpu.memory_space<vmem>>, vector<8x1xf32>,
    return
  }
}

</mosaic_0001>

<llo_original>
// kernel: deephage_forward.1
$region0: #{deephage_forward.1}
  #allocation0 [shape = 'u32[]', space=smem, size = 0x4, offset = 0x4, fixed_abs, tag = 'smem constant byte address 0x4 - core index']
  #allocation1 [shape = 'u32[144,128]{1,0:T(1,128)}', space=vmem, size = 0x12000, scoped, tag = 'internal scratch']
  %s0 = inlined_call_operand.vmem [shape: f32[808,64], index: 0, kind: input, shape index: {}]
  %s1 = inlined_call_operand.vmem [shape: f32[16,128], index: 1, kind: input, shape index: {}]
  %s2 = inlined_call_operand.vmem [shape: bf16[192,128], index: 2, kind: input, shape index: {}]
  %s3 = inlined_call_operand.vmem [shape: f32[128,64], index: 3, kind: input, shape index: {}]
  %s4 = inlined_call_operand.vmem [shape: f32[8,1], index: 4, kind: output, shape index: {}]
  %s5 = sld [smem:[#allocation0]]
  $region26: #{deephage_forward.1} parent=0
    _
  %s7 = ssub.s32 1, %s5
  %s8 = scalar_select 0, %s7, %s5
  // Predicated region
  $region2: #{deephage_forward.1} parent=0 // pred_check
    _
  $region3: #{deephage_forward.1} parent=0 // pred_check_branch
    %10 = sbr.rel (0) target = $region5
  $region4: #{deephage_forward.1} parent=0 // pred_region
    _
  $region5: #{deephage_forward.1} parent=0 // pred_fallthru
    _
  // Predicated region
  $region6: #{deephage_forward.1} parent=0 // pred_check
    _
  $region7: #{deephage_forward.1} parent=0 // pred_check_branch
    %12 = sbr.rel (0) target = $region9
  $region8: #{deephage_forward.1} parent=0 // pred_region
    _
  $region9: #{deephage_forward.1} parent=0 // pred_fallthru
    _
  // Predicated region
  $region10: #{deephage_forward.1} parent=0 // pred_check
    _
  $region11: #{deephage_forward.1} parent=0 // pred_check_branch
    %14 = sbr.rel (0) target = $region13
  $region12: #{deephage_forward.1} parent=0 // pred_region
    _
  $region13: #{deephage_forward.1} parent=0 // pred_fallthru
    _
  // Predicated region
  $region14: #{deephage_forward.1} parent=0 // pred_check
    _
  $region15: #{deephage_forward.1} parent=0 // pred_check_branch
    %16 = sbr.rel (0) target = $region17
  $region16: #{deephage_forward.1} parent=0 // pred_region
    _
  $region17: #{deephage_forward.1} parent=0 // pred_fallthru
    _
  %v18 = vld [vmem:[%s1] sm:$0xff]
  %v19 = vld [vmem:[%s1 + $0x8] sm:$0xff]
  %v20 = vld [vmem:[%s0] sm:$0xff]
  %v21 = vld [vmem:[%s0 + $0x8] sm:$0xff]
  %v22 = vld [vmem:[%s0 + $0x10] sm:$0xff]
  %v23 = vld [vmem:[%s0 + $0x18] sm:$0xff]
  %v24 = vld [vmem:[%s0 + $0x20] sm:$0xff]
  %v25 = vld [vmem:[%s0 + $0x28] sm:$0xff]
  %v26 = vld [vmem:[%s0 + $0x30] sm:$0xff]
  %v27 = vld [vmem:[%s0 + $0x38] sm:$0xff]
  %v28 = vld [vmem:[%s0 + $0x40] sm:$0xff]
  %v29 = vld [vmem:[%s0 + $0x48] sm:$0xff]
  %v30 = vld [vmem:[%s0 + $0x50] sm:$0xff]
  %v31 = vld [vmem:[%s0 + $0x58] sm:$0xff]
  %v32 = vld [vmem:[%s0 + $0x60] sm:$0xff]
  %v33 = vld [vmem:[%s0 + $0x68] sm:$0xff]
  %v34 = vld [vmem:[%s0 + $0x70] sm:$0xff]
  %v35 = vld [vmem:[%s0 + $0x78] sm:$0xff]
  %v36 = vld [vmem:[%s0 + $0x80] sm:$0xff]
  %v37 = vld [vmem:[%s0 + $0x88] sm:$0xff]
  %v38 = vld [vmem:[%s0 + $0x90] sm:$0xff]
  %v39 = vld [vmem:[%s0 + $0x98] sm:$0xff]
  %v40 = vld [vmem:[%s0 + $0xa0] sm:$0xff]
  %v41 = vld [vmem:[%s0 + $0xa8] sm:$0xff]
  %v42 = vld [vmem:[%s0 + $0xb0] sm:$0xff]
  %v43 = vld [vmem:[%s0 + $0xb8] sm:$0xff]
  %v44 = vld [vmem:[%s0 + $0xc0] sm:$0xff]
  %v45 = vld [vmem:[%s0 + $0xc8] sm:$0xff]
  %v46 = vld [vmem:[%s0 + $0xd0] sm:$0xff]
  %v47 = vld [vmem:[%s0 + $0xd8] sm:$0xff]
  %v48 = vld [vmem:[%s0 + $0xe0] sm:$0xff]
  %v49 = vld [vmem:[%s0 + $0xe8] sm:$0xff]
  %v50 = vld [vmem:[%s0 + $0xf0] sm:$0xff]
  %v51 = vld [vmem:[%s0 + $0xf8] sm:$0xff]
  %v52 = vld [vmem:[%s0 + $0x100] sm:$0xff]
  %v53 = vld [vmem:[%s0 + $0x108] sm:$0xff]
  %v54 = vld [vmem:[%s0 + $0x110] sm:$0xff]
  %v55 = vld [vmem:[%s0 + $0x118] sm:$0xff]
  %v56 = vld [vmem:[%s0 + $0x120] sm:$0xff]
  %v57 = vld [vmem:[%s0 + $0x128] sm:$0xff]
  %v58 = vld [vmem:[%s0 + $0x130] sm:$0xff]
  %v59 = vld [vmem:[%s0 + $0x138] sm:$0xff]
  %v60 = vld [vmem:[%s0 + $0x140] sm:$0xff]
  %v61 = vld [vmem:[%s0 + $0x148] sm:$0xff]
  %v62 = vld [vmem:[%s0 + $0x150] sm:$0xff]
  %v63 = vld [vmem:[%s0 + $0x158] sm:$0xff]
  %v64 = vld [vmem:[%s0 + $0x160] sm:$0xff]
  %v65 = vld [vmem:[%s0 + $0x168] sm:$0xff]
  %v66 = vld [vmem:[%s0 + $0x170] sm:$0xff]
  %v67 = vld [vmem:[%s0 + $0x178] sm:$0xff]
  %v68 = vld [vmem:[%s0 + $0x180] sm:$0xff]
  %v69 = vld [vmem:[%s0 + $0x188] sm:$0xff]
  %v70 = vld [vmem:[%s0 + $0x190] sm:$0xff]
  %v71 = vld [vmem:[%s0 + $0x198] sm:$0xff]
  %v72 = vld [vmem:[%s0 + $0x1a0] sm:$0xff]
  %v73 = vld [vmem:[%s0 + $0x1a8] sm:$0xff]
  %v74 = vld [vmem:[%s0 + $0x1b0] sm:$0xff]
  %v75 = vld [vmem:[%s0 + $0x1b8] sm:$0xff]
  %v76 = vld [vmem:[%s0 + $0x1c0] sm:$0xff]
  %v77 = vld [vmem:[%s0 + $0x1c8] sm:$0xff]
  %v78 = vld [vmem:[%s0 + $0x1d0] sm:$0xff]
  %v79 = vld [vmem:[%s0 + $0x1d8] sm:$0xff]
  %v80 = vld [vmem:[%s0 + $0x1e0] sm:$0xff]
  %v81 = vld [vmem:[%s0 + $0x1e8] sm:$0xff]
  %v82 = vld [vmem:[%s0 + $0x1f0] sm:$0xff]
  %v83 = vld [vmem:[%s0 + $0x1f8] sm:$0xff]
  %v84 = vld [vmem:[%s0 + $0x200] sm:$0xff]
  %v85 = vld [vmem:[%s0 + $0x208] sm:$0xff]
  %v86 = vld [vmem:[%s0 + $0x210] sm:$0xff]
  %v87 = vld [vmem:[%s0 + $0x218] sm:$0xff]
  %v88 = vld [vmem:[%s0 + $0x220] sm:$0xff]
  %v89 = vld [vmem:[%s0 + $0x228] sm:$0xff]
  %v90 = vld [vmem:[%s0 + $0x230] sm:$0xff]
  %v91 = vld [vmem:[%s0 + $0x238] sm:$0xff]
  %v92 = vld [vmem:[%s0 + $0x240] sm:$0xff]
  %v93 = vld [vmem:[%s0 + $0x248] sm:$0xff]
  %v94 = vld [vmem:[%s0 + $0x250] sm:$0xff]
  %v95 = vld [vmem:[%s0 + $0x258] sm:$0xff]
  %v96 = vld [vmem:[%s0 + $0x260] sm:$0xff]
  %v97 = vld [vmem:[%s0 + $0x268] sm:$0xff]
  %v98 = vld [vmem:[%s0 + $0x270] sm:$0xff]
  %v99 = vld [vmem:[%s0 + $0x278] sm:$0xff]
  %v100 = vld [vmem:[%s0 + $0x280] sm:$0xff]
  %v101 = vld [vmem:[%s0 + $0x288] sm:$0xff]
  %v102 = vld [vmem:[%s0 + $0x290] sm:$0xff]
  %v103 = vld [vmem:[%s0 + $0x298] sm:$0xff]
  %v104 = vld [vmem:[%s0 + $0x2a0] sm:$0xff]
  %v105 = vld [vmem:[%s0 + $0x2a8] sm:$0xff]
  %v106 = vld [vmem:[%s0 + $0x2b0] sm:$0xff]
  %v107 = vld [vmem:[%s0 + $0x2b8] sm:$0xff]
  %v108 = vld [vmem:[%s0 + $0x2c0] sm:$0xff]
  %v109 = vld [vmem:[%s0 + $0x2c8] sm:$0xff]
  %v110 = vld [vmem:[%s0 + $0x2d0] sm:$0xff]
  %v111 = vld [vmem:[%s0 + $0x2d8] sm:$0xff]
  %v112 = vld [vmem:[%s0 + $0x2e0] sm:$0xff]
  %v113 = vld [vmem:[%s0 + $0x2e8] sm:$0xff]
  %v114 = vld [vmem:[%s0 + $0x2f0] sm:$0xff]
  %v115 = vld [vmem:[%s0 + $0x2f8] sm:$0xff]
  %v116 = vlaneseq
  %v117 = vshrl.u32 %v116, 7
  %v118 = vsub.s32 0, %v117
  %v119 = vrot.slane %v18, %v118
  %v120 = vmul.f32 %v20, %v119
  %v121 = vmul.f32 %v21, %v119
  %v122 = vmul.f32 %v22, %v119
  %v123 = vmul.f32 %v23, %v119
  %v124 = vmul.f32 %v24, %v119
  %v125 = vmul.f32 %v25, %v119
  %v126 = vmul.f32 %v26, %v119
  %v127 = vmul.f32 %v27, %v119
  %v128 = vmul.f32 %v28, %v119
  %v129 = vmul.f32 %v29, %v119
  %v130 = vmul.f32 %v30, %v119
  %v131 = vmul.f32 %v31, %v119
  %v132 = vmul.f32 %v32, %v119
  %v133 = vmul.f32 %v33, %v119
  %v134 = vmul.f32 %v34, %v119
  %v135 = vmul.f32 %v35, %v119
  %v136 = vmul.f32 %v36, %v119
  %v137 = vmul.f32 %v37, %v119
  %v138 = vmul.f32 %v38, %v119
  %v139 = vmul.f32 %v39, %v119
  %v140 = vmul.f32 %v40, %v119
  %v141 = vmul.f32 %v41, %v119
  %v142 = vmul.f32 %v42, %v119
  %v143 = vmul.f32 %v43, %v119
  %v144 = vmul.f32 %v44, %v119
  %v145 = vmul.f32 %v45, %v119
  %v146 = vmul.f32 %v46, %v119
  %v147 = vmul.f32 %v47, %v119
  %v148 = vmul.f32 %v48, %v119
  %v149 = vmul.f32 %v49, %v119
  %v150 = vmul.f32 %v50, %v119
  %v151 = vmul.f32 %v51, %v119
  %v152 = vmul.f32 %v52, %v119
  %v153 = vmul.f32 %v53, %v119
  %v154 = vmul.f32 %v54, %v119
  %v155 = vmul.f32 %v55, %v119
  %v156 = vmul.f32 %v56, %v119
  %v157 = vmul.f32 %v57, %v119
  %v158 = vmul.f32 %v58, %v119
  %v159 = vmul.f32 %v59, %v119
  %v160 = vmul.f32 %v60, %v119
  %v161 = vmul.f32 %v61, %v119
  %v162 = vmul.f32 %v62, %v119
  %v163 = vmul.f32 %v63, %v119
  %v164 = vmul.f32 %v64, %v119
  %v165 = vmul.f32 %v65, %v119
  %v166 = vmul.f32 %v66, %v119
  %v167 = vmul.f32 %v67, %v119
  %v168 = vmul.f32 %v68, %v119
  %v169 = vmul.f32 %v69, %v119
  %v170 = vmul.f32 %v70, %v119
  %v171 = vmul.f32 %v71, %v119
  %v172 = vmul.f32 %v72, %v119
  %v173 = vmul.f32 %v73, %v119
  %v174 = vmul.f32 %v74, %v119
  %v175 = vmul.f32 %v75, %v119
  %v176 = vmul.f32 %v76, %v119
  %v177 = vmul.f32 %v77, %v119
  %v178 = vmul.f32 %v78, %v119
  %v179 = vmul.f32 %v79, %v119
  %v180 = vmul.f32 %v80, %v119
  %v181 = vmul.f32 %v81, %v119
  %v182 = vmul.f32 %v82, %v119
  %v183 = vmul.f32 %v83, %v119
  %v184 = vmul.f32 %v84, %v119
  %v185 = vmul.f32 %v85, %v119
  %v186 = vmul.f32 %v86, %v119
  %v187 = vmul.f32 %v87, %v119
  %v188 = vmul.f32 %v88, %v119
  %v189 = vmul.f32 %v89, %v119
  %v190 = vmul.f32 %v90, %v119
  %v191 = vmul.f32 %v91, %v119
  %v192 = vmul.f32 %v92, %v119
  %v193 = vmul.f32 %v93, %v119
  %v194 = vmul.f32 %v94, %v119
  %v195 = vmul.f32 %v95, %v119
  %v196 = vmul.f32 %v96, %v119
  %v197 = vmul.f32 %v97, %v119
  %v198 = vmul.f32 %v98, %v119
  %v199 = vmul.f32 %v99, %v119
  %v200 = vmul.f32 %v100, %v119
  %v201 = vmul.f32 %v101, %v119
  %v202 = vmul.f32 %v102, %v119
  %v203 = vmul.f32 %v103, %v119
  %v204 = vmul.f32 %v104, %v119
  %v205 = vmul.f32 %v105, %v119
  %v206 = vmul.f32 %v106, %v119
  %v207 = vmul.f32 %v107, %v119
  %v208 = vmul.f32 %v108, %v119
  %v209 = vmul.f32 %v109, %v119
  %v210 = vmul.f32 %v110, %v119
  %v211 = vmul.f32 %v111, %v119
  %v212 = vmul.f32 %v112, %v119
  %v213 = vmul.f32 %v113, %v119
  %v214 = vmul.f32 %v114, %v119
  %v215 = vmul.f32 %v115, %v119
  %v216 = vld [vmem:[%s0 + $0x300] sm:$0xff]
  %v217 = vlaneseq
  %v218 = vshrl.u32 %v217, 7
  %v219 = vsub.s32 1, %v218
  %v220 = vrot.slane %v18, %v219
  %v221 = vmul.f32 %v21, %v220
  %v222 = vmul.f32 %v22, %v220
  %v223 = vmul.f32 %v23, %v220
  %v224 = vmul.f32 %v24, %v220
  %v225 = vmul.f32 %v25, %v220
  %v226 = vmul.f32 %v26, %v220
  %v227 = vmul.f32 %v27, %v220
  %v228 = vmul.f32 %v28, %v220
  %v229 = vmul.f32 %v29, %v220
  %v230 = vmul.f32 %v30, %v220
  %v231 = vmul.f32 %v31, %v220
  %v232 = vmul.f32 %v32, %v220
  %v233 = vmul.f32 %v33, %v220
  %v234 = vmul.f32 %v34, %v220
  %v235 = vmul.f32 %v35, %v220
  %v236 = vmul.f32 %v36, %v220
  %v237 = vmul.f32 %v37, %v220
  %v238 = vmul.f32 %v38, %v220
  %v239 = vmul.f32 %v39, %v220
  %v240 = vmul.f32 %v40, %v220
  %v241 = vmul.f32 %v41, %v220
  %v242 = vmul.f32 %v42, %v220
  %v243 = vmul.f32 %v43, %v220
  %v244 = vmul.f32 %v44, %v220
  %v245 = vmul.f32 %v45, %v220
  %v246 = vmul.f32 %v46, %v220
  %v247 = vmul.f32 %v47, %v220
  %v248 = vmul.f32 %v48, %v220
  %v249 = vmul.f32 %v49, %v220
  %v250 = vmul.f32 %v50, %v220
  %v251 = vmul.f32 %v51, %v220
  %v252 = vmul.f32 %v52, %v220
  %v253 = vmul.f32 %v53, %v220
  %v254 = vmul.f32 %v54, %v220
  %v255 = vmul.f32 %v55, %v220
  %v256 = vmul.f32 %v56, %v220
  %v257 = vmul.f32 %v57, %v220
  %v258 = vmul.f32 %v58, %v220
  %v259 = vmul.f32 %v59, %v220
  %v260 = vmul.f32 %v60, %v220
  %v261 = vmul.f32 %v61, %v220
  %v262 = vmul.f32 %v62, %v220
  %v263 = vmul.f32 %v63, %v220
  %v264 = vmul.f32 %v64, %v220
  %v265 = vmul.f32 %v65, %v220
  %v266 = vmul.f32 %v66, %v220
  %v267 = vmul.f32 %v67, %v220
  %v268 = vmul.f32 %v68, %v220
  %v269 = vmul.f32 %v69, %v220
  %v270 = vmul.f32 %v70, %v220
  %v271 = vmul.f32 %v71, %v220
  %v272 = vmul.f32 %v72, %v220
  %v273 = vmul.f32 %v73, %v220
  %v274 = vmul.f32 %v74, %v220
  %v275 = vmul.f32 %v75, %v220
  %v276 = vmul.f32 %v76, %v220
  %v277 = vmul.f32 %v77, %v220
  %v278 = vmul.f32 %v78, %v220
  %v279 = vmul.f32 %v79, %v220
  %v280 = vmul.f32 %v80, %v220
  %v281 = vmul.f32 %v81, %v220
  %v282 = vmul.f32 %v82, %v220
  %v283 = vmul.f32 %v83, %v220
  %v284 = vmul.f32 %v84, %v220
  %v285 = vmul.f32 %v85, %v220
  %v286 = vmul.f32 %v86, %v220
  %v287 = vmul.f32 %v87, %v220
  %v288 = vmul.f32 %v88, %v220
  %v289 = vmul.f32 %v89, %v220
  %v290 = vmul.f32 %v90, %v220
  %v291 = vmul.f32 %v91, %v220
  %v292 = vmul.f32 %v92, %v220
  %v293 = vmul.f32 %v93, %v220
  %v294 = vmul.f32 %v94, %v220
  %v295 = vmul.f32 %v95, %v220
  %v296 = vmul.f32 %v96, %v220
  %v297 = vmul.f32 %v97, %v220
  %v298 = vmul.f32 %v98, %v220
  %v299 = vmul.f32 %v99, %v220
  %v300 = vmul.f32 %v100, %v220
  %v301 = vmul.f32 %v101, %v220
  %v302 = vmul.f32 %v102, %v220
  %v303 = vmul.f32 %v103, %v220
  %v304 = vmul.f32 %v104, %v220
  %v305 = vmul.f32 %v105, %v220
  %v306 = vmul.f32 %v106, %v220
  %v307 = vmul.f32 %v107, %v220
  %v308 = vmul.f32 %v108, %v220
  %v309 = vmul.f32 %v109, %v220
  %v310 = vmul.f32 %v110, %v220
  %v311 = vmul.f32 %v111, %v220
  %v312 = vmul.f32 %v112, %v220
  %v313 = vmul.f32 %v113, %v220
  %v314 = vmul.f32 %v114, %v220
  %v315 = vmul.f32 %v115, %v220
  %v316 = vmul.f32 %v216, %v220
  %v317 = vadd.f32 %v120, %v221
  %v318 = vadd.f32 %v121, %v222
  %v319 = vadd.f32 %v122, %v223
  %v320 = vadd.f32 %v123, %v224
  %v321 = vadd.f32 %v124, %v225
  %v322 = vadd.f32 %v125, %v226
  %v323 = vadd.f32 %v126, %v227
  %v324 = vadd.f32 %v127, %v228
  %v325 = vadd.f32 %v128, %v229
  %v326 = vadd.f32 %v129, %v230
  %v327 = vadd.f32 %v130, %v231
  %v328 = vadd.f32 %v131, %v232
  %v329 = vadd.f32 %v132, %v233
  %v330 = vadd.f32 %v133, %v234
  %v331 = vadd.f32 %v134, %v235
  %v332 = vadd.f32 %v135, %v236
  %v333 = vadd.f32 %v136, %v237
  %v334 = vadd.f32 %v137, %v238
  %v335 = vadd.f32 %v138, %v239
  %v336 = vadd.f32 %v139, %v240
  %v337 = vadd.f32 %v140, %v241
  %v338 = vadd.f32 %v141, %v242
  %v339 = vadd.f32 %v142, %v243
  %v340 = vadd.f32 %v143, %v244
  %v341 = vadd.f32 %v144, %v245
  %v342 = vadd.f32 %v145, %v246
  %v343 = vadd.f32 %v146, %v247
  %v344 = vadd.f32 %v147, %v248
  %v345 = vadd.f32 %v148, %v249
  %v346 = vadd.f32 %v149, %v250
  %v347 = vadd.f32 %v150, %v251
  %v348 = vadd.f32 %v151, %v252
  %v349 = vadd.f32 %v152, %v253
  %v350 = vadd.f32 %v153, %v254
  %v351 = vadd.f32 %v154, %v255
  %v352 = vadd.f32 %v155, %v256
  %v353 = vadd.f32 %v156, %v257
  %v354 = vadd.f32 %v157, %v258
  %v355 = vadd.f32 %v158, %v259
  %v356 = vadd.f32 %v159, %v260
  %v357 = vadd.f32 %v160, %v261
  %v358 = vadd.f32 %v161, %v262
  %v359 = vadd.f32 %v162, %v263
  %v360 = vadd.f32 %v163, %v264
  %v361 = vadd.f32 %v164, %v265
  %v362 = vadd.f32 %v165, %v266
  %v363 = vadd.f32 %v166, %v267
  %v364 = vadd.f32 %v167, %v268
  %v365 = vadd.f32 %v168, %v269
  %v366 = vadd.f32 %v169, %v270
  %v367 = vadd.f32 %v170, %v271
  %v368 = vadd.f32 %v171, %v272
  %v369 = vadd.f32 %v172, %v273
  %v370 = vadd.f32 %v173, %v274
  %v371 = vadd.f32 %v174, %v275
  %v372 = vadd.f32 %v175, %v276
  %v373 = vadd.f32 %v176, %v277
  %v374 = vadd.f32 %v177, %v278
  %v375 = vadd.f32 %v178, %v279
  %v376 = vadd.f32 %v179, %v280
  %v377 = vadd.f32 %v180, %v281
  %v378 = vadd.f32 %v181, %v282
  %v379 = vadd.f32 %v182, %v283
  %v380 = vadd.f32 %v183, %v284
  %v381 = vadd.f32 %v184, %v285
  %v382 = vadd.f32 %v185, %v286
  %v383 = vadd.f32 %v186, %v287
  %v384 = vadd.f32 %v187, %v288
  %v385 = vadd.f32 %v188, %v289
  %v386 = vadd.f32 %v189, %v290
  %v387 = vadd.f32 %v190, %v291
  %v388 = vadd.f32 %v191, %v292
  %v389 = vadd.f32 %v192, %v293
  %v390 = vadd.f32 %v193, %v294
  %v391 = vadd.f32 %v194, %v295
  %v392 = vadd.f32 %v195, %v296
  %v393 = vadd.f32 %v196, %v297
  %v394 = vadd.f32 %v197, %v298
  %v395 = vadd.f32 %v198, %v299
  %v396 = vadd.f32 %v199, %v300
  %v397 = vadd.f32 %v200, %v301
  %v398 = vadd.f32 %v201, %v302
  %v399 = vadd.f32 %v202, %v303
  %v400 = vadd.f32 %v203, %v304
  %v401 = vadd.f32 %v204, %v305
  %v402 = vadd.f32 %v205, %v306
  %v403 = vadd.f32 %v206, %v307
  %v404 = vadd.f32 %v207, %v308
  %v405 = vadd.f32 %v208, %v309
  %v406 = vadd.f32 %v209, %v310
  %v407 = vadd.f32 %v210, %v311
  %v408 = vadd.f32 %v211, %v312
  %v409 = vadd.f32 %v212, %v313
  %v410 = vadd.f32 %v213, %v314
  %v411 = vadd.f32 %v214, %v315
  %v412 = vadd.f32 %v215, %v316
  %v413 = vld [vmem:[%s0 + $0x308] sm:$0xff]
  %v414 = vlaneseq
  %v415 = vshrl.u32 %v414, 7
  %v416 = vsub.s32 2, %v415
  %v417 = vrot.slane %v18, %v416
  %v418 = vmul.f32 %v22, %v417
  %v419 = vmul.f32 %v23, %v417
  %v420 = vmul.f32 %v24, %v417
  %v421 = vmul.f32 %v25, %v417
  %v422 = vmul.f32 %v26, %v417
  %v423 = vmul.f32 %v27, %v417
  %v424 = vmul.f32 %v28, %v417
  %v425 = vmul.f32 %v29, %v417
  %v426 = vmul.f32 %v30, %v417
  %v427 = vmul.f32 %v31, %v417
  %v428 = vmul.f32 %v32, %v417
  %v429 = vmul.f32 %v33, %v417
  %v430 = vmul.f32 %v34, %v417
  %v431 = vmul.f32 %v35, %v417
  %v432 = vmul.f32 %v36, %v417
  %v433 = vmul.f32 %v37, %v417
  %v434 = vmul.f32 %v38, %v417
  %v435 = vmul.f32 %v39, %v417
  %v436 = vmul.f32 %v40, %v417
  %v437 = vmul.f32 %v41, %v417
  %v438 = vmul.f32 %v42, %v417
  %v439 = vmul.f32 %v43, %v417
  %v440 = vmul.f32 %v44, %v417
  %v441 = vmul.f32 %v45, %v417
  %v442 = vmul.f32 %v46, %v417
  %v443 = vmul.f32 %v47, %v417
  %v444 = vmul.f32 %v48, %v417
  %v445 = vmul.f32 %v49, %v417
  %v446 = vmul.f32 %v50, %v417
  %v447 = vmul.f32 %v51, %v417
  %v448 = vmul.f32 %v52, %v417
  %v449 = vmul.f32 %v53, %v417
  %v450 = vmul.f32 %v54, %v417
  %v451 = vmul.f32 %v55, %v417
  %v452 = vmul.f32 %v56, %v417
  %v453 = vmul.f32 %v57, %v417
  %v454 = vmul.f32 %v58, %v417
  %v455 = vmul.f32 %v59, %v417
  %v456 = vmul.f32 %v60, %v417
  %v457 = vmul.f32 %v61, %v417
  %v458 = vmul.f32 %v62, %v417
  %v459 = vmul.f32 %v63, %v417
  %v460 = vmul.f32 %v64, %v417
  %v461 = vmul.f32 %v65, %v417
  %v462 = vmul.f32 %v66, %v417
  %v463 = vmul.f32 %v67, %v417
  %v464 = vmul.f32 %v68, %v417
  %v465 = vmul.f32 %v69, %v417
  %v466 = vmul.f32 %v70, %v417
  %v467 = vmul.f32 %v71, %v417
  %v468 = vmul.f32 %v72, %v417
  %v469 = vmul.f32 %v73, %v417
  %v470 = vmul.f32 %v74, %v417
  %v471 = vmul.f32 %v75, %v417
  %v472 = vmul.f32 %v76, %v417
  %v473 = vmul.f32 %v77, %v417
  %v474 = vmul.f32 %v78, %v417
  %v475 = vmul.f32 %v79, %v417
  %v476 = vmul.f32 %v80, %v417
  %v477 = vmul.f32 %v81, %v417
  %v478 = vmul.f32 %v82, %v417
  %v479 = vmul.f32 %v83, %v417
  %v480 = vmul.f32 %v84, %v417
  %v481 = vmul.f32 %v85, %v417
  %v482 = vmul.f32 %v86, %v417
  %v483 = vmul.f32 %v87, %v417
  %v484 = vmul.f32 %v88, %v417
  %v485 = vmul.f32 %v89, %v417
  %v486 = vmul.f32 %v90, %v417
  %v487 = vmul.f32 %v91, %v417
  %v488 = vmul.f32 %v92, %v417
  %v489 = vmul.f32 %v93, %v417
  %v490 = vmul.f32 %v94, %v417
  %v491 = vmul.f32 %v95, %v417
  %v492 = vmul.f32 %v96, %v417
  %v493 = vmul.f32 %v97, %v417
  %v494 = vmul.f32 %v98, %v417
  %v495 = vmul.f32 %v99, %v417
  %v496 = vmul.f32 %v100, %v417
  %v497 = vmul.f32 %v101, %v417
  %v498 = vmul.f32 %v102, %v417
  %v499 = vmul.f32 %v103, %v417
  %v500 = vmul.f32 %v104, %v417
  %v501 = vmul.f32 %v105, %v417
  %v502 = vmul.f32 %v106, %v417
  %v503 = vmul.f32 %v107, %v417
  %v504 = vmul.f32 %v108, %v417
  %v505 = vmul.f32 %v109, %v417
  %v506 = vmul.f32 %v110, %v417
  %v507 = vmul.f32 %v111, %v417
  %v508 = vmul.f32 %v112, %v417
  %v509 = vmul.f32 %v113, %v417
  %v510 = vmul.f32 %v114, %v417
  %v511 = vmul.f32 %v115, %v417
  %v512 = vmul.f32 %v216, %v417
  %v513 = vmul.f32 %v413, %v417
  %v514 = vadd.f32 %v317, %v418
  %v515 = vadd.f32 %v318, %v419
  %v516 = vadd.f32 %v319, %v420
  %v517 = vadd.f32 %v320, %v421
  %v518 = vadd.f32 %v321, %v422
  %v519 = vadd.f32 %v322, %v423
  %v520 = vadd.f32 %v323, %v424
  %v521 = vadd.f32 %v324, %v425
  %v522 = vadd.f32 %v325, %v426
  %v523 = vadd.f32 %v326, %v427
  %v524 = vadd.f32 %v327, %v428
  %v525 = vadd.f32 %v328, %v429
  %v526 = vadd.f32 %v329, %v430
  %v527 = vadd.f32 %v330, %v431
  %v528 = vadd.f32 %v331, %v432
  %v529 = vadd.f32 %v332, %v433
  %v530 = vadd.f32 %v333, %v434
  %v531 = vadd.f32 %v334, %v435
  %v532 = vadd.f32 %v335, %v436
  %v533 = vadd.f32 %v336, %v437
  %v534 = vadd.f32 %v337, %v438
  %v535 = vadd.f32 %v338, %v439
  %v536 = vadd.f32 %v339, %v440
  %v537 = vadd.f32 %v340, %v441
  %v538 = vadd.f32 %v341, %v442
  %v539 = vadd.f32 %v342, %v443
  %v540 = vadd.f32 %v343, %v444
  %v541 = vadd.f32 %v344, %v445
  %v542 = vadd.f32 %v345, %v446
  %v543 = vadd.f32 %v346, %v447
  %v544 = vadd.f32 %v347, %v448
  %v545 = vadd.f32 %v348, %v449
  %v546 = vadd.f32 %v349, %v450
  %v547 = vadd.f32 %v350, %v451
  %v548 = vadd.f32 %v351, %v452
  %v549 = vadd.f32 %v352, %v453
  %v550 = vadd.f32 %v353, %v454
  %v551 = vadd.f32 %v354, %v455
  %v552 = vadd.f32 %v355, %v456
  %v553 = vadd.f32 %v356, %v457
  %v554 = vadd.f32 %v357, %v458
  %v555 = vadd.f32 %v358, %v459
  %v556 = vadd.f32 %v359, %v460
  %v557 = vadd.f32 %v360, %v461
  %v558 = vadd.f32 %v361, %v462
  %v559 = vadd.f32 %v362, %v463
  %v560 = vadd.f32 %v363, %v464
  %v561 = vadd.f32 %v364, %v465
  %v562 = vadd.f32 %v365, %v466
  %v563 = vadd.f32 %v366, %v467
  %v564 = vadd.f32 %v367, %v468
  %v565 = vadd.f32 %v368, %v469
  %v566 = vadd.f32 %v369, %v470
  %v567 = vadd.f32 %v370, %v471
  %v568 = vadd.f32 %v371, %v472
  %v569 = vadd.f32 %v372, %v473
  %v570 = vadd.f32 %v373, %v474
  %v571 = vadd.f32 %v374, %v475
  %v572 = vadd.f32 %v375, %v476
  %v573 = vadd.f32 %v376, %v477
  %v574 = vadd.f32 %v377, %v478
  %v575 = vadd.f32 %v378, %v479
  %v576 = vadd.f32 %v379, %v480
  %v577 = vadd.f32 %v380, %v481
  %v578 = vadd.f32 %v381, %v482
  %v579 = vadd.f32 %v382, %v483
  %v580 = vadd.f32 %v383, %v484
  %v581 = vadd.f32 %v384, %v485
  %v582 = vadd.f32 %v385, %v486
  %v583 = vadd.f32 %v386, %v487
  %v584 = vadd.f32 %v387, %v488
  %v585 = vadd.f32 %v388, %v489
  %v586 = vadd.f32 %v389, %v490
  %v587 = vadd.f32 %v390, %v491
  %v588 = vadd.f32 %v391, %v492
  %v589 = vadd.f32 %v392, %v493
  %v590 = vadd.f32 %v393, %v494
  %v591 = vadd.f32 %v394, %v495
  %v592 = vadd.f32 %v395, %v496
  %v593 = vadd.f32 %v396, %v497
  %v594 = vadd.f32 %v397, %v498
  %v595 = vadd.f32 %v398, %v499
  %v596 = vadd.f32 %v399, %v500
  %v597 = vadd.f32 %v400, %v501
  %v598 = vadd.f32 %v401, %v502
  %v599 = vadd.f32 %v402, %v503
  %v600 = vadd.f32 %v403, %v504
  %v601 = vadd.f32 %v404, %v505
  %v602 = vadd.f32 %v405, %v506
  %v603 = vadd.f32 %v406, %v507
  %v604 = vadd.f32 %v407, %v508
  %v605 = vadd.f32 %v408, %v509
  %v606 = vadd.f32 %v409, %v510
  %v607 = vadd.f32 %v410, %v511
  %v608 = vadd.f32 %v411, %v512
  %v609 = vadd.f32 %v412, %v513
  %v610 = vld [vmem:[%s0 + $0x310] sm:$0xff]
  %v611 = vlaneseq
  %v612 = vshrl.u32 %v611, 7
  %v613 = vsub.s32 3, %v612
  %v614 = vrot.slane %v18, %v613
  %v615 = vmul.f32 %v23, %v614
  %v616 = vmul.f32 %v24, %v614
  %v617 = vmul.f32 %v25, %v614
  %v618 = vmul.f32 %v26, %v614
  %v619 = vmul.f32 %v27, %v614
  %v620 = vmul.f32 %v28, %v614
  %v621 = vmul.f32 %v29, %v614
  %v622 = vmul.f32 %v30, %v614
  %v623 = vmul.f32 %v31, %v614
  %v624 = vmul.f32 %v32, %v614
  %v625 = vmul.f32 %v33, %v614
  %v626 = vmul.f32 %v34, %v614
  %v627 = vmul.f32 %v35, %v614
  %v628 = vmul.f32 %v36, %v614
  %v629 = vmul.f32 %v37, %v614
  %v630 = vmul.f32 %v38, %v614
  %v631 = vmul.f32 %v39, %v614
  %v632 = vmul.f32 %v40, %v614
  %v633 = vmul.f32 %v41, %v614
  %v634 = vmul.f32 %v42, %v614
  %v635 = vmul.f32 %v43, %v614
  %v636 = vmul.f32 %v44, %v614
  %v637 = vmul.f32 %v45, %v614
  %v638 = vmul.f32 %v46, %v614
  %v639 = vmul.f32 %v47, %v614
  %v640 = vmul.f32 %v48, %v614
  %v641 = vmul.f32 %v49, %v614
  %v642 = vmul.f32 %v50, %v614
  %v643 = vmul.f32 %v51, %v614
  %v644 = vmul.f32 %v52, %v614
  %v645 = vmul.f32 %v53, %v614
  %v646 = vmul.f32 %v54, %v614
  %v647 = vmul.f32 %v55, %v614
  %v648 = vmul.f32 %v56, %v614
  %v649 = vmul.f32 %v57, %v614
  %v650 = vmul.f32 %v58, %v614
  %v651 = vmul.f32 %v59, %v614
  %v652 = vmul.f32 %v60, %v614
  %v653 = vmul.f32 %v61, %v614
  %v654 = vmul.f32 %v62, %v614
  %v655 = vmul.f32 %v63, %v614
  %v656 = vmul.f32 %v64, %v614
  %v657 = vmul.f32 %v65, %v614
  %v658 = vmul.f32 %v66, %v614
  %v659 = vmul.f32 %v67, %v614
  %v660 = vmul.f32 %v68, %v614
  %v661 = vmul.f32 %v69, %v614
  %v662 = vmul.f32 %v70, %v614
  %v663 = vmul.f32 %v71, %v614
  %v664 = vmul.f32 %v72, %v614
  %v665 = vmul.f32 %v73, %v614
  %v666 = vmul.f32 %v74, %v614
  %v667 = vmul.f32 %v75, %v614
  %v668 = vmul.f32 %v76, %v614
  %v669 = vmul.f32 %v77, %v614
  %v670 = vmul.f32 %v78, %v614
  %v671 = vmul.f32 %v79, %v614
  %v672 = vmul.f32 %v80, %v614
  %v673 = vmul.f32 %v81, %v614
  %v674 = vmul.f32 %v82, %v614
  %v675 = vmul.f32 %v83, %v614
  %v676 = vmul.f32 %v84, %v614
  %v677 = vmul.f32 %v85, %v614
  %v678 = vmul.f32 %v86, %v614
  %v679 = vmul.f32 %v87, %v614
  %v680 = vmul.f32 %v88, %v614
  %v681 = vmul.f32 %v89, %v614
  %v682 = vmul.f32 %v90, %v614
  %v683 = vmul.f32 %v91, %v614
  %v684 = vmul.f32 %v92, %v614
  %v685 = vmul.f32 %v93, %v614
  %v686 = vmul.f32 %v94, %v614
  %v687 = vmul.f32 %v95, %v614
  %v688 = vmul.f32 %v96, %v614
  %v689 = vmul.f32 %v97, %v614
  %v690 = vmul.f32 %v98, %v614
  %v691 = vmul.f32 %v99, %v614
  %v692 = vmul.f32 %v100, %v614
  %v693 = vmul.f32 %v101, %v614
  %v694 = vmul.f32 %v102, %v614
  %v695 = vmul.f32 %v103, %v614
  %v696 = vmul.f32 %v104, %v614
  %v697 = vmul.f32 %v105, %v614
  %v698 = vmul.f32 %v106, %v614
  %v699 = vmul.f32 %v107, %v614
  %v700 = vmul.f32 %v108, %v614
  %v701 = vmul.f32 %v109, %v614
  %v702 = vmul.f32 %v110, %v614
  %v703 = vmul.f32 %v111, %v614
  %v704 = vmul.f32 %v112, %v614
  %v705 = vmul.f32 %v113, %v614
  %v706 = vmul.f32 %v114, %v614
  %v707 = vmul.f32 %v115, %v614
  %v708 = vmul.f32 %v216, %v614
  %v709 = vmul.f32 %v413, %v614
  %v710 = vmul.f32 %v610, %v614
  %v711 = vadd.f32 %v514, %v615
  %v712 = vadd.f32 %v515, %v616
  %v713 = vadd.f32 %v516, %v617
  %v714 = vadd.f32 %v517, %v618
  %v715 = vadd.f32 %v518, %v619
  %v716 = vadd.f32 %v519, %v620
  %v717 = vadd.f32 %v520, %v621
  %v718 = vadd.f32 %v521, %v622
  %v719 = vadd.f32 %v522, %v623
  %v720 = vadd.f32 %v523, %v624
  %v721 = vadd.f32 %v524, %v625
  %v722 = vadd.f32 %v525, %v626
  %v723 = vadd.f32 %v526, %v627
  %v724 = vadd.f32 %v527, %v628
  %v725 = vadd.f32 %v528, %v629
  %v726 = vadd.f32 %v529, %v630
  %v727 = vadd.f32 %v530, %v631
  %v728 = vadd.f32 %v531, %v632
  %v729 = vadd.f32 %v532, %v633
  %v730 = vadd.f32 %v533, %v634
  %v731 = vadd.f32 %v534, %v635
  %v732 = vadd.f32 %v535, %v636
  %v733 = vadd.f32 %v536, %v637
  %v734 = vadd.f32 %v537, %v638
  %v735 = vadd.f32 %v538, %v639
  %v736 = vadd.f32 %v539, %v640
  %v737 = vadd.f32 %v540, %v641
  %v738 = vadd.f32 %v541, %v642
  %v739 = vadd.f32 %v542, %v643
  %v740 = vadd.f32 %v543, %v644
  %v741 = vadd.f32 %v544, %v645
  %v742 = vadd.f32 %v545, %v646
  %v743 = vadd.f32 %v546, %v647
  %v744 = vadd.f32 %v547, %v648
  %v745 = vadd.f32 %v548, %v649
  %v746 = vadd.f32 %v549, %v650
  %v747 = vadd.f32 %v550, %v651
  %v748 = vadd.f32 %v551, %v652
  %v749 = vadd.f32 %v552, %v653
  %v750 = vadd.f32 %v553, %v654
  %v751 = vadd.f32 %v554, %v655
  %v752 = vadd.f32 %v555, %v656
  %v753 = vadd.f32 %v556, %v657
  %v754 = vadd.f32 %v557, %v658
  %v755 = vadd.f32 %v558, %v659
  %v756 = vadd.f32 %v559, %v660
  %v757 = vadd.f32 %v560, %v661
  %v758 = vadd.f32 %v561, %v662
  %v759 = vadd.f32 %v562, %v663
  %v760 = vadd.f32 %v563, %v664
  %v761 = vadd.f32 %v564, %v665
  %v762 = vadd.f32 %v565, %v666
  %v763 = vadd.f32 %v566, %v667
  %v764 = vadd.f32 %v567, %v668
  %v765 = vadd.f32 %v568, %v669
  %v766 = vadd.f32 %v569, %v670
  %v767 = vadd.f32 %v570, %v671
  %v768 = vadd.f32 %v571, %v672
  %v769 = vadd.f32 %v572, %v673
  %v770 = vadd.f32 %v573, %v674
  %v771 = vadd.f32 %v574, %v675
  %v772 = vadd.f32 %v575, %v676
  %v773 = vadd.f32 %v576, %v677
  %v774 = vadd.f32 %v577, %v678
  %v775 = vadd.f32 %v578, %v679
  %v776 = vadd.f32 %v579, %v680
  %v777 = vadd.f32 %v580, %v681
  %v778 = vadd.f32 %v581, %v682
  %v779 = vadd.f32 %v582, %v683
  %v780 = vadd.f32 %v583, %v684
  %v781 = vadd.f32 %v584, %v685
  %v782 = vadd.f32 %v585, %v686
  %v783 = vadd.f32 %v586, %v687
  %v784 = vadd.f32 %v587, %v688
  %v785 = vadd.f32 %v588, %v689
  %v786 = vadd.f32 %v589, %v690
  %v787 = vadd.f32 %v590, %v691
  %v788 = vadd.f32 %v591, %v692
  %v789 = vadd.f32 %v592, %v693
  %v790 = vadd.f32 %v593, %v694
  %v791 = vadd.f32 %v594, %v695
  %v792 = vadd.f32 %v595, %v696
  %v793 = vadd.f32 %v596, %v697
  %v794 = vadd.f32 %v597, %v698
  %v795 = vadd.f32 %v598, %v699
  %v796 = vadd.f32 %v599, %v700
  %v797 = vadd.f32 %v600, %v701
  %v798 = vadd.f32 %v601, %v702
  %v799 = vadd.f32 %v602, %v703
  %v800 = vadd.f32 %v603, %v704
  %v801 = vadd.f32 %v604, %v705
  %v802 = vadd.f32 %v605, %v706
  %v803 = vadd.f32 %v606, %v707
  %v804 = vadd.f32 %v607, %v708
  %v805 = vadd.f32 %v608, %v709
  %v806 = vadd.f32 %v609, %v710
  %v807 = vld [vmem:[%s0 + $0x318] sm:$0xff]
  %v808 = vlaneseq
  %v809 = vshrl.u32 %v808, 7
  %v810 = vsub.s32 4, %v809
  %v811 = vrot.slane %v18, %v810
  %v812 = vmul.f32 %v24, %v811
  %v813 = vmul.f32 %v25, %v811
  %v814 = vmul.f32 %v26, %v811
  %v815 = vmul.f32 %v27, %v811
  %v816 = vmul.f32 %v28, %v811
  %v817 = vmul.f32 %v29, %v811
  %v818 = vmul.f32 %v30, %v811
  %v819 = vmul.f32 %v31, %v811
  %v820 = vmul.f32 %v32, %v811
  %v821 = vmul.f32 %v33, %v811
  %v822 = vmul.f32 %v34, %v811
  %v823 = vmul.f32 %v35, %v811
  %v824 = vmul.f32 %v36, %v811
  %v825 = vmul.f32 %v37, %v811
  %v826 = vmul.f32 %v38, %v811
  %v827 = vmul.f32 %v39, %v811
  %v828 = vmul.f32 %v40, %v811
  %v829 = vmul.f32 %v41, %v811
  %v830 = vmul.f32 %v42, %v811
  %v831 = vmul.f32 %v43, %v811
  %v832 = vmul.f32 %v44, %v811
  %v833 = vmul.f32 %v45, %v811
  %v834 = vmul.f32 %v46, %v811
  %v835 = vmul.f32 %v47, %v811
  %v836 = vmul.f32 %v48, %v811
  %v837 = vmul.f32 %v49, %v811
  %v838 = vmul.f32 %v50, %v811
  %v839 = vmul.f32 %v51, %v811
  %v840 = vmul.f32 %v52, %v811
  %v841 = vmul.f32 %v53, %v811
  %v842 = vmul.f32 %v54, %v811
  %v843 = vmul.f32 %v55, %v811
  %v844 = vmul.f32 %v56, %v811
  %v845 = vmul.f32 %v57, %v811
  %v846 = vmul.f32 %v58, %v811
  %v847 = vmul.f32 %v59, %v811
  %v848 = vmul.f32 %v60, %v811
  %v849 = vmul.f32 %v61, %v811
  %v850 = vmul.f32 %v62, %v811
  %v851 = vmul.f32 %v63, %v811
  %v852 = vmul.f32 %v64, %v811
  %v853 = vmul.f32 %v65, %v811
  %v854 = vmul.f32 %v66, %v811
  %v855 = vmul.f32 %v67, %v811
  %v856 = vmul.f32 %v68, %v811
  %v857 = vmul.f32 %v69, %v811
  %v858 = vmul.f32 %v70, %v811
  %v859 = vmul.f32 %v71, %v811
  %v860 = vmul.f32 %v72, %v811
  %v861 = vmul.f32 %v73, %v811
  %v862 = vmul.f32 %v74, %v811
  %v863 = vmul.f32 %v75, %v811
  %v864 = vmul.f32 %v76, %v811
  %v865 = vmul.f32 %v77, %v811
  %v866 = vmul.f32 %v78, %v811
  %v867 = vmul.f32 %v79, %v811
  %v868 = vmul.f32 %v80, %v811
  %v869 = vmul.f32 %v81, %v811
  %v870 = vmul.f32 %v82, %v811
  %v871 = vmul.f32 %v83, %v811
  %v872 = vmul.f32 %v84, %v811
  %v873 = vmul.f32 %v85, %v811
  %v874 = vmul.f32 %v86, %v811
  %v875 = vmul.f32 %v87, %v811
  %v876 = vmul.f32 %v88, %v811
  %v877 = vmul.f32 %v89, %v811
  %v878 = vmul.f32 %v90, %v811
  %v879 = vmul.f32 %v91, %v811
  %v880 = vmul.f32 %v92, %v811
  %v881 = vmul.f32 %v93, %v811
  %v882 = vmul.f32 %v94, %v811
  %v883 = vmul.f32 %v95, %v811
  %v884 = vmul.f32 %v96, %v811
  %v885 = vmul.f32 %v97, %v811
  %v886 = vmul.f32 %v98, %v811
  %v887 = vmul.f32 %v99, %v811
  %v888 = vmul.f32 %v100, %v811
  %v889 = vmul.f32 %v101, %v811
  %v890 = vmul.f32 %v102, %v811
  %v891 = vmul.f32 %v103, %v811
  %v892 = vmul.f32 %v104, %v811
  %v893 = vmul.f32 %v105, %v811
  %v894 = vmul.f32 %v106, %v811
  %v895 = vmul.f32 %v107, %v811
  %v896 = vmul.f32 %v108, %v811
  %v897 = vmul.f32 %v109, %v811
  %v898 = vmul.f32 %v110, %v811
  %v899 = vmul.f32 %v111, %v811
  %v900 = vmul.f32 %v112, %v811
  %v901 = vmul.f32 %v113, %v811
  %v902 = vmul.f32 %v114, %v811
  %v903 = vmul.f32 %v115, %v811
  %v904 = vmul.f32 %v216, %v811
  %v905 = vmul.f32 %v413, %v811
  %v906 = vmul.f32 %v610, %v811
  %v907 = vmul.f32 %v807, %v811
  %v908 = vadd.f32 %v711, %v812
  %v909 = vadd.f32 %v712, %v813
  %v910 = vadd.f32 %v713, %v814
  %v911 = vadd.f32 %v714, %v815
  %v912 = vadd.f32 %v715, %v816
  %v913 = vadd.f32 %v716, %v817
  %v914 = vadd.f32 %v717, %v818
  %v915 = vadd.f32 %v718, %v819
  %v916 = vadd.f32 %v719, %v820
  %v917 = vadd.f32 %v720, %v821
  %v918 = vadd.f32 %v721, %v822
  %v919 = vadd.f32 %v722, %v823
  %v920 = vadd.f32 %v723, %v824
  %v921 = vadd.f32 %v724, %v825
  %v922 = vadd.f32 %v725, %v826
  %v923 = vadd.f32 %v726, %v827
  %v924 = vadd.f32 %v727, %v828
  %v925 = vadd.f32 %v728, %v829
  %v926 = vadd.f32 %v729, %v830
  %v927 = vadd.f32 %v730, %v831
  %v928 = vadd.f32 %v731, %v832
  %v929 = vadd.f32 %v732, %v833
  %v930 = vadd.f32 %v733, %v834
  %v931 = vadd.f32 %v734, %v835
  %v932 = vadd.f32 %v735, %v836
  %v933 = vadd.f32 %v736, %v837
  %v934 = vadd.f32 %v737, %v838
  %v935 = vadd.f32 %v738, %v839
  %v936 = vadd.f32 %v739, %v840
  %v937 = vadd.f32 %v740, %v841
  %v938 = vadd.f32 %v741, %v842
  %v939 = vadd.f32 %v742, %v843
  %v940 = vadd.f32 %v743, %v844
  %v941 = vadd.f32 %v744, %v845
  %v942 = vadd.f32 %v745, %v846
  %v943 = vadd.f32 %v746, %v847
  %v944 = vadd.f32 %v747, %v848
  %v945 = vadd.f32 %v748, %v849
  %v946 = vadd.f32 %v749, %v850
  %v947 = vadd.f32 %v750, %v851
  %v948 = vadd.f32 %v751, %v852
  %v949 = vadd.f32 %v752, %v853
  %v950 = vadd.f32 %v753, %v854
  %v951 = vadd.f32 %v754, %v855
  %v952 = vadd.f32 %v755, %v856
  %v953 = vadd.f32 %v756, %v857
  %v954 = vadd.f32 %v757, %v858
  %v955 = vadd.f32 %v758, %v859
  %v956 = vadd.f32 %v759, %v860
  %v957 = vadd.f32 %v760, %v861
  %v958 = vadd.f32 %v761, %v862
  %v959 = vadd.f32 %v762, %v863
  %v960 = vadd.f32 %v763, %v864
  %v961 = vadd.f32 %v764, %v865
  %v962 = vadd.f32 %v765, %v866
  %v963 = vadd.f32 %v766, %v867
  %v964 = vadd.f32 %v767, %v868
  %v965 = vadd.f32 %v768, %v869
  %v966 = vadd.f32 %v769, %v870
  %v967 = vadd.f32 %v770, %v871
  %v968 = vadd.f32 %v771, %v872
  %v969 = vadd.f32 %v772, %v873
  %v970 = vadd.f32 %v773, %v874
  %v971 = vadd.f32 %v774, %v875
  %v972 = vadd.f32 %v775, %v876
  %v973 = vadd.f32 %v776, %v877
  %v974 = vadd.f32 %v777, %v878
  %v975 = vadd.f32 %v778, %v879
  %v976 = vadd.f32 %v779, %v880
  %v977 = vadd.f32 %v780, %v881
  %v978 = vadd.f32 %v781, %v882
  %v979 = vadd.f32 %v782, %v883
  %v980 = vadd.f32 %v783, %v884
  %v981 = vadd.f32 %v784, %v885
  %v982 = vadd.f32 %v785, %v886
  %v983 = vadd.f32 %v786, %v887
  %v984 = vadd.f32 %v787, %v888
  %v985 = vadd.f32 %v788, %v889
  %v986 = vadd.f32 %v789, %v890
  %v987 = vadd.f32 %v790, %v891
  %v988 = vadd.f32 %v791, %v892
  %v989 = vadd.f32 %v792, %v893
  %v990 = vadd.f32 %v793, %v894
  %v991 = vadd.f32 %v794, %v895
  %v992 = vadd.f32 %v795, %v896
  %v993 = vadd.f32 %v796, %v897
  %v994 = vadd.f32 %v797, %v898
  %v995 = vadd.f32 %v798, %v899
  %v996 = vadd.f32 %v799, %v900
  %v997 = vadd.f32 %v800, %v901
  %v998 = vadd.f32 %v801, %v902
  %v999 = vadd.f32 %v802, %v903
  %v1000 = vadd.f32 %v803, %v904
  %v1001 = vadd.f32 %v804, %v905
  %v1002 = vadd.f32 %v805, %v906
  %v1003 = vadd.f32 %v806, %v907
  %v1004 = vld [vmem:[%s0 + $0x320] sm:$0xff]
  %v1005 = vlaneseq
  %v1006 = vshrl.u32 %v1005, 7
  %v1007 = vsub.s32 5, %v1006
  %v1008 = vrot.slane %v18, %v1007
  %v1009 = vmul.f32 %v25, %v1008
  %v1010 = vmul.f32 %v26, %v1008
  %v1011 = vmul.f32 %v27, %v1008
  %v1012 = vmul.f32 %v28, %v1008
  %v1013 = vmul.f32 %v29, %v1008
  %v1014 = vmul.f32 %v30, %v1008
  %v1015 = vmul.f32 %v31, %v1008
  %v1016 = vmul.f32 %v32, %v1008
  %v1017 = vmul.f32 %v33, %v1008
  %v1018 = vmul.f32 %v34, %v1008
  %v1019 = vmul.f32 %v35, %v1008
  %v1020 = vmul.f32 %v36, %v1008
  %v1021 = vmul.f32 %v37, %v1008
  %v1022 = vmul.f32 %v38, %v1008
  %v1023 = vmul.f32 %v39, %v1008
  %v1024 = vmul.f32 %v40, %v1008
  %v1025 = vmul.f32 %v41, %v1008
  %v1026 = vmul.f32 %v42, %v1008
  %v1027 = vmul.f32 %v43, %v1008
  %v1028 = vmul.f32 %v44, %v1008
  %v1029 = vmul.f32 %v45, %v1008
  %v1030 = vmul.f32 %v46, %v1008
  %v1031 = vmul.f32 %v47, %v1008
  %v1032 = vmul.f32 %v48, %v1008
  %v1033 = vmul.f32 %v49, %v1008
  %v1034 = vmul.f32 %v50, %v1008
  %v1035 = vmul.f32 %v51, %v1008
  %v1036 = vmul.f32 %v52, %v1008
  %v1037 = vmul.f32 %v53, %v1008
  %v1038 = vmul.f32 %v54, %v1008
  %v1039 = vmul.f32 %v55, %v1008
  %v1040 = vmul.f32 %v56, %v1008
  %v1041 = vmul.f32 %v57, %v1008
  %v1042 = vmul.f32 %v58, %v1008
  %v1043 = vmul.f32 %v59, %v1008
  %v1044 = vmul.f32 %v60, %v1008
  %v1045 = vmul.f32 %v61, %v1008
  %v1046 = vmul.f32 %v62, %v1008
  %v1047 = vmul.f32 %v63, %v1008
  %v1048 = vmul.f32 %v64, %v1008
  %v1049 = vmul.f32 %v65, %v1008
  %v1050 = vmul.f32 %v66, %v1008
  %v1051 = vmul.f32 %v67, %v1008
  %v1052 = vmul.f32 %v68, %v1008
  %v1053 = vmul.f32 %v69, %v1008
  %v1054 = vmul.f32 %v70, %v1008
  %v1055 = vmul.f32 %v71, %v1008
  %v1056 = vmul.f32 %v72, %v1008
  %v1057 = vmul.f32 %v73, %v1008
  %v1058 = vmul.f32 %v74, %v1008
  %v1059 = vmul.f32 %v75, %v1008
  %v1060 = vmul.f32 %v76, %v1008
  %v1061 = vmul.f32 %v77, %v1008
  %v1062 = vmul.f32 %v78, %v1008
  %v1063 = vmul.f32 %v79, %v1008
  %v1064 = vmul.f32 %v80, %v1008
  %v1065 = vmul.f32 %v81, %v1008
  %v1066 = vmul.f32 %v82, %v1008
  %v1067 = vmul.f32 %v83, %v1008
  %v1068 = vmul.f32 %v84, %v1008
  %v1069 = vmul.f32 %v85, %v1008
  %v1070 = vmul.f32 %v86, %v1008
  %v1071 = vmul.f32 %v87, %v1008
  %v1072 = vmul.f32 %v88, %v1008
  %v1073 = vmul.f32 %v89, %v1008
  %v1074 = vmul.f32 %v90, %v1008
  %v1075 = vmul.f32 %v91, %v1008
  %v1076 = vmul.f32 %v92, %v1008
  %v1077 = vmul.f32 %v93, %v1008
  %v1078 = vmul.f32 %v94, %v1008
  %v1079 = vmul.f32 %v95, %v1008
  %v1080 = vmul.f32 %v96, %v1008
  %v1081 = vmul.f32 %v97, %v1008
  %v1082 = vmul.f32 %v98, %v1008
  %v1083 = vmul.f32 %v99, %v1008
  %v1084 = vmul.f32 %v100, %v1008
  %v1085 = vmul.f32 %v101, %v1008
  %v1086 = vmul.f32 %v102, %v1008
  %v1087 = vmul.f32 %v103, %v1008
  %v1088 = vmul.f32 %v104, %v1008
  %v1089 = vmul.f32 %v105, %v1008
  %v1090 = vmul.f32 %v106, %v1008
  %v1091 = vmul.f32 %v107, %v1008
  %v1092 = vmul.f32 %v108, %v1008
  %v1093 = vmul.f32 %v109, %v1008
  %v1094 = vmul.f32 %v110, %v1008
  %v1095 = vmul.f32 %v111, %v1008
  %v1096 = vmul.f32 %v112, %v1008
  %v1097 = vmul.f32 %v113, %v1008
  %v1098 = vmul.f32 %v114, %v1008
  %v1099 = vmul.f32 %v115, %v1008
  %v1100 = vmul.f32 %v216, %v1008
  %v1101 = vmul.f32 %v413, %v1008
  %v1102 = vmul.f32 %v610, %v1008
  %v1103 = vmul.f32 %v807, %v1008
  %v1104 = vmul.f32 %v1004, %v1008
  %v1105 = vadd.f32 %v908, %v1009
  %v1106 = vadd.f32 %v909, %v1010
  %v1107 = vadd.f32 %v910, %v1011
  %v1108 = vadd.f32 %v911, %v1012
  %v1109 = vadd.f32 %v912, %v1013
  %v1110 = vadd.f32 %v913, %v1014
  %v1111 = vadd.f32 %v914, %v1015
  %v1112 = vadd.f32 %v915, %v1016
  %v1113 = vadd.f32 %v916, %v1017
  %v1114 = vadd.f32 %v917, %v1018
  %v1115 = vadd.f32 %v918, %v1019
  %v1116 = vadd.f32 %v919, %v1020
  %v1117 = vadd.f32 %v920, %v1021
  %v1118 = vadd.f32 %v921, %v1022
  %v1119 = vadd.f32 %v922, %v1023
  %v1120 = vadd.f32 %v923, %v1024
  %v1121 = vadd.f32 %v924, %v1025
  %v1122 = vadd.f32 %v925, %v1026
  %v1123 = vadd.f32 %v926, %v1027
  %v1124 = vadd.f32 %v927, %v1028
  %v1125 = vadd.f32 %v928, %v1029
  %v1126 = vadd.f32 %v929, %v1030
  %v1127 = vadd.f32 %v930, %v1031
  %v1128 = vadd.f32 %v931, %v1032
  %v1129 = vadd.f32 %v932, %v1033
  %v1130 = vadd.f32 %v933, %v1034
  %v1131 = vadd.f32 %v934, %v1035
  %v1132 = vadd.f32 %v935, %v1036
  %v1133 = vadd.f32 %v936, %v1037
  %v1134 = vadd.f32 %v937, %v1038
  %v1135 = vadd.f32 %v938, %v1039
  %v1136 = vadd.f32 %v939, %v1040
  %v1137 = vadd.f32 %v940, %v1041
  %v1138 = vadd.f32 %v941, %v1042
  %v1139 = vadd.f32 %v942, %v1043
  %v1140 = vadd.f32 %v943, %v1044
  %v1141 = vadd.f32 %v944, %v1045
  %v1142 = vadd.f32 %v945, %v1046
  %v1143 = vadd.f32 %v946, %v1047
  %v1144 = vadd.f32 %v947, %v1048
  %v1145 = vadd.f32 %v948, %v1049
  %v1146 = vadd.f32 %v949, %v1050
  %v1147 = vadd.f32 %v950, %v1051
  %v1148 = vadd.f32 %v951, %v1052
  %v1149 = vadd.f32 %v952, %v1053
  %v1150 = vadd.f32 %v953, %v1054
  %v1151 = vadd.f32 %v954, %v1055
  %v1152 = vadd.f32 %v955, %v1056
  %v1153 = vadd.f32 %v956, %v1057
  %v1154 = vadd.f32 %v957, %v1058
  %v1155 = vadd.f32 %v958, %v1059
  %v1156 = vadd.f32 %v959, %v1060
  %v1157 = vadd.f32 %v960, %v1061
  %v1158 = vadd.f32 %v961, %v1062
  %v1159 = vadd.f32 %v962, %v1063
  %v1160 = vadd.f32 %v963, %v1064
  %v1161 = vadd.f32 %v964, %v1065
  %v1162 = vadd.f32 %v965, %v1066
  %v1163 = vadd.f32 %v966, %v1067
  %v1164 = vadd.f32 %v967, %v1068
  %v1165 = vadd.f32 %v968, %v1069
  %v1166 = vadd.f32 %v969, %v1070
  %v1167 = vadd.f32 %v970, %v1071
  %v1168 = vadd.f32 %v971, %v1072
  %v1169 = vadd.f32 %v972, %v1073
  %v1170 = vadd.f32 %v973, %v1074
  %v1171 = vadd.f32 %v974, %v1075
  %v1172 = vadd.f32 %v975, %v1076
  %v1173 = vadd.f32 %v976, %v1077
  %v1174 = vadd.f32 %v977, %v1078
  %v1175 = vadd.f32 %v978, %v1079
  %v1176 = vadd.f32 %v979, %v1080
  %v1177 = vadd.f32 %v980, %v1081
  %v1178 = vadd.f32 %v981, %v1082
  %v1179 = vadd.f32 %v982, %v1083
  %v1180 = vadd.f32 %v983, %v1084
  %v1181 = vadd.f32 %v984, %v1085
  %v1182 = vadd.f32 %v985, %v1086
  %v1183 = vadd.f32 %v986, %v1087
  %v1184 = vadd.f32 %v987, %v1088
  %v1185 = vadd.f32 %v988, %v1089
  %v1186 = vadd.f32 %v989, %v1090
  %v1187 = vadd.f32 %v990, %v1091
  %v1188 = vadd.f32 %v991, %v1092
  %v1189 = vadd.f32 %v992, %v1093
  %v1190 = vadd.f32 %v993, %v1094
  %v1191 = vadd.f32 %v994, %v1095
  %v1192 = vadd.f32 %v995, %v1096
  %v1193 = vadd.f32 %v996, %v1097
  %v1194 = vadd.f32 %v997, %v1098
  %v1195 = vadd.f32 %v998, %v1099
  %v1196 = vadd.f32 %v999, %v1100
  %v1197 = vadd.f32 %v1000, %v1101
  %v1198 = vadd.f32 %v1001, %v1102
  %v1199 = vadd.f32 %v1002, %v1103
  %v1200 = vadd.f32 %v1003, %v1104
  %v1201 = vlaneseq
  %v1202 = vshrl.u32 %v1201, 7
  %v1203 = vsub.s32 6, %v1202
  %v1204 = vrot.slane %v18, %v1203
  %v1205 = vadd.f32 %v1105, %v1204
  %v1206 = vadd.f32 %v1106, %v1204
  %v1207 = vadd.f32 %v1107, %v1204
  %v1208 = vadd.f32 %v1108, %v1204
  %v1209 = vadd.f32 %v1109, %v1204
  %v1210 = vadd.f32 %v1110, %v1204
  %v1211 = vadd.f32 %v1111, %v1204
  %v1212 = vadd.f32 %v1112, %v1204
  %v1213 = vadd.f32 %v1113, %v1204
  %v1214 = vadd.f32 %v1114, %v1204
  %v1215 = vadd.f32 %v1115, %v1204
  %v1216 = vadd.f32 %v1116, %v1204
  %v1217 = vadd.f32 %v1117, %v1204
  %v1218 = vadd.f32 %v1118, %v1204
  %v1219 = vadd.f32 %v1119, %v1204
  %v1220 = vadd.f32 %v1120, %v1204
  %v1221 = vadd.f32 %v1121, %v1204
  %v1222 = vadd.f32 %v1122, %v1204
  %v1223 = vadd.f32 %v1123, %v1204
  %v1224 = vadd.f32 %v1124, %v1204
  %v1225 = vadd.f32 %v1125, %v1204
  %v1226 = vadd.f32 %v1126, %v1204
  %v1227 = vadd.f32 %v1127, %v1204
  %v1228 = vadd.f32 %v1128, %v1204
  %v1229 = vadd.f32 %v1129, %v1204
  %v1230 = vadd.f32 %v1130, %v1204
  %v1231 = vadd.f32 %v1131, %v1204
  %v1232 = vadd.f32 %v1132, %v1204
  %v1233 = vadd.f32 %v1133, %v1204
  %v1234 = vadd.f32 %v1134, %v1204
  %v1235 = vadd.f32 %v1135, %v1204
  %v1236 = vadd.f32 %v1136, %v1204
  %v1237 = vadd.f32 %v1137, %v1204
  %v1238 = vadd.f32 %v1138, %v1204
  %v1239 = vadd.f32 %v1139, %v1204
  %v1240 = vadd.f32 %v1140, %v1204
  %v1241 = vadd.f32 %v1141, %v1204
  %v1242 = vadd.f32 %v1142, %v1204
  %v1243 = vadd.f32 %v1143, %v1204
  %v1244 = vadd.f32 %v1144, %v1204
  %v1245 = vadd.f32 %v1145, %v1204
  %v1246 = vadd.f32 %v1146, %v1204
  %v1247 = vadd.f32 %v1147, %v1204
  %v1248 = vadd.f32 %v1148, %v1204
  %v1249 = vadd.f32 %v1149, %v1204
  %v1250 = vadd.f32 %v1150, %v1204
  %v1251 = vadd.f32 %v1151, %v1204
  %v1252 = vadd.f32 %v1152, %v1204
  %v1253 = vadd.f32 %v1153, %v1204
  %v1254 = vadd.f32 %v1154, %v1204
  %v1255 = vadd.f32 %v1155, %v1204
  %v1256 = vadd.f32 %v1156, %v1204
  %v1257 = vadd.f32 %v1157, %v1204
  %v1258 = vadd.f32 %v1158, %v1204
  %v1259 = vadd.f32 %v1159, %v1204
  %v1260 = vadd.f32 %v1160, %v1204
  %v1261 = vadd.f32 %v1161, %v1204
  %v1262 = vadd.f32 %v1162, %v1204
  %v1263 = vadd.f32 %v1163, %v1204
  %v1264 = vadd.f32 %v1164, %v1204
  %v1265 = vadd.f32 %v1165, %v1204
  %v1266 = vadd.f32 %v1166, %v1204
  %v1267 = vadd.f32 %v1167, %v1204
  %v1268 = vadd.f32 %v1168, %v1204
  %v1269 = vadd.f32 %v1169, %v1204
  %v1270 = vadd.f32 %v1170, %v1204
  %v1271 = vadd.f32 %v1171, %v1204
  %v1272 = vadd.f32 %v1172, %v1204
  %v1273 = vadd.f32 %v1173, %v1204
  %v1274 = vadd.f32 %v1174, %v1204
  %v1275 = vadd.f32 %v1175, %v1204
  %v1276 = vadd.f32 %v1176, %v1204
  %v1277 = vadd.f32 %v1177, %v1204
  %v1278 = vadd.f32 %v1178, %v1204
  %v1279 = vadd.f32 %v1179, %v1204
  %v1280 = vadd.f32 %v1180, %v1204
  %v1281 = vadd.f32 %v1181, %v1204
  %v1282 = vadd.f32 %v1182, %v1204
  %v1283 = vadd.f32 %v1183, %v1204
  %v1284 = vadd.f32 %v1184, %v1204
  %v1285 = vadd.f32 %v1185, %v1204
  %v1286 = vadd.f32 %v1186, %v1204
  %v1287 = vadd.f32 %v1187, %v1204
  %v1288 = vadd.f32 %v1188, %v1204
  %v1289 = vadd.f32 %v1189, %v1204
  %v1290 = vadd.f32 %v1190, %v1204
  %v1291 = vadd.f32 %v1191, %v1204
  %v1292 = vadd.f32 %v1192, %v1204
  %v1293 = vadd.f32 %v1193, %v1204
  %v1294 = vadd.f32 %v1194, %v1204
  %v1295 = vadd.f32 %v1195, %v1204
  %v1296 = vadd.f32 %v1196, %v1204
  %v1297 = vadd.f32 %v1197, %v1204
  %v1298 = vadd.f32 %v1198, %v1204
  %v1299 = vadd.f32 %v1199, %v1204
  %v1300 = vadd.f32 %v1200, %v1204
  %v1301 = vmax.f32 %v1205, %v1206
  %v1302 = vmax.f32 %v1208, %v1209
  %v1303 = vmax.f32 %v1211, %v1212
  %v1304 = vmax.f32 %v1214, %v1215
  %v1305 = vmax.f32 %v1217, %v1218
  %v1306 = vmax.f32 %v1220, %v1221
  %v1307 = vmax.f32 %v1223, %v1224
  %v1308 = vmax.f32 %v1226, %v1227
  %v1309 = vmax.f32 %v1229, %v1230
  %v1310 = vmax.f32 %v1232, %v1233
  %v1311 = vmax.f32 %v1235, %v1236
  %v1312 = vmax.f32 %v1238, %v1239
  %v1313 = vmax.f32 %v1241, %v1242
  %v1314 = vmax.f32 %v1244, %v1245
  %v1315 = vmax.f32 %v1247, %v1248
  %v1316 = vmax.f32 %v1250, %v1251
  %v1317 = vmax.f32 %v1253, %v1254
  %v1318 = vmax.f32 %v1256, %v1257
  %v1319 = vmax.f32 %v1259, %v1260
  %v1320 = vmax.f32 %v1262, %v1263
  %v1321 = vmax.f32 %v1265, %v1266
  %v1322 = vmax.f32 %v1268, %v1269
  %v1323 = vmax.f32 %v1271, %v1272
  %v1324 = vmax.f32 %v1274, %v1275
  %v1325 = vmax.f32 %v1277, %v1278
  %v1326 = vmax.f32 %v1280, %v1281
  %v1327 = vmax.f32 %v1283, %v1284
  %v1328 = vmax.f32 %v1286, %v1287
  %v1329 = vmax.f32 %v1289, %v1290
  %v1330 = vmax.f32 %v1292, %v1293
  %v1331 = vmax.f32 %v1295, %v1296
  %v1332 = vmax.f32 %v1298, %v1299
  %v1333 = vmax.f32 %v1301, %v1207
  %v1334 = vmax.f32 %v1302, %v1210
  %v1335 = vmax.f32 %v1303, %v1213
  %v1336 = vmax.f32 %v1304, %v1216
  %v1337 = vmax.f32 %v1305, %v1219
  %v1338 = vmax.f32 %v1306, %v1222
  %v1339 = vmax.f32 %v1307, %v1225
  %v1340 = vmax.f32 %v1308, %v1228
  %v1341 = vmax.f32 %v1309, %v1231
  %v1342 = vmax.f32 %v1310, %v1234
  %v1343 = vmax.f32 %v1311, %v1237
  %v1344 = vmax.f32 %v1312, %v1240
  %v1345 = vmax.f32 %v1313, %v1243
  %v1346 = vmax.f32 %v1314, %v1246
  %v1347 = vmax.f32 %v1315, %v1249
  %v1348 = vmax.f32 %v1316, %v1252
  %v1349 = vmax.f32 %v1317, %v1255
  %v1350 = vmax.f32 %v1318, %v1258
  %v1351 = vmax.f32 %v1319, %v1261
  %v1352 = vmax.f32 %v1320, %v1264
  %v1353 = vmax.f32 %v1321, %v1267
  %v1354 = vmax.f32 %v1322, %v1270
  %v1355 = vmax.f32 %v1323, %v1273
  %v1356 = vmax.f32 %v1324, %v1276
  %v1357 = vmax.f32 %v1325, %v1279
  %v1358 = vmax.f32 %v1326, %v1282
  %v1359 = vmax.f32 %v1327, %v1285
  %v1360 = vmax.f32 %v1328, %v1288
  %v1361 = vmax.f32 %v1329, %v1291
  %v1362 = vmax.f32 %v1330, %v1294
  %v1363 = vmax.f32 %v1331, %v1297
  %v1364 = vmax.f32 %v1332, %v1300
  %v1365 = vmax.f32 %v1333, 0.0
  %v1366 = vmax.f32 %v1334, 0.0
  %v1367 = vmax.f32 %v1335, 0.0
  %v1368 = vmax.f32 %v1336, 0.0
  %v1369 = vmax.f32 %v1337, 0.0
  %v1370 = vmax.f32 %v1338, 0.0
  %v1371 = vmax.f32 %v1339, 0.0
  %v1372 = vmax.f32 %v1340, 0.0
  %v1373 = vmax.f32 %v1341, 0.0
  %v1374 = vmax.f32 %v1342, 0.0
  %v1375 = vmax.f32 %v1343, 0.0
  %v1376 = vmax.f32 %v1344, 0.0
  %v1377 = vmax.f32 %v1345, 0.0
  %v1378 = vmax.f32 %v1346, 0.0
  %v1379 = vmax.f32 %v1347, 0.0
  %v1380 = vmax.f32 %v1348, 0.0
  %v1381 = vmax.f32 %v1349, 0.0
  %v1382 = vmax.f32 %v1350, 0.0
  %v1383 = vmax.f32 %v1351, 0.0
  %v1384 = vmax.f32 %v1352, 0.0
  %v1385 = vmax.f32 %v1353, 0.0
  %v1386 = vmax.f32 %v1354, 0.0
  %v1387 = vmax.f32 %v1355, 0.0
  %v1388 = vmax.f32 %v1356, 0.0
  %v1389 = vmax.f32 %v1357, 0.0
  %v1390 = vmax.f32 %v1358, 0.0
  %v1391 = vmax.f32 %v1359, 0.0
  %v1392 = vmax.f32 %v1360, 0.0
  %v1393 = vmax.f32 %v1361, 0.0
  %v1394 = vmax.f32 %v1362, 0.0
  %v1395 = vmax.f32 %v1363, 0.0
  %v1396 = vmax.f32 %v1364, 0.0
  %v1397 = vlaneseq
  %v1398 = vshrl.u32 %v1397, 7
  %v1399 = vsub.s32 7, %v1398
  %v1400 = vrot.slane %v18, %v1399
  %v1401 = vmul.f32 %v1365, %v1400
  %v1402 = vmul.f32 %v1366, %v1400
  %v1403 = vmul.f32 %v1367, %v1400
  %v1404 = vmul.f32 %v1368, %v1400
  %v1405 = vmul.f32 %v1369, %v1400
  %v1406 = vmul.f32 %v1370, %v1400
  %v1407 = vmul.f32 %v1371, %v1400
  %v1408 = vmul.f32 %v1372, %v1400
  %v1409 = vmul.f32 %v1373, %v1400
  %v1410 = vmul.f32 %v1374, %v1400
  %v1411 = vmul.f32 %v1375, %v1400
  %v1412 = vmul.f32 %v1376, %v1400
  %v1413 = vmul.f32 %v1377, %v1400
  %v1414 = vmul.f32 %v1378, %v1400
  %v1415 = vmul.f32 %v1379, %v1400
  %v1416 = vmul.f32 %v1380, %v1400
  %v1417 = vmul.f32 %v1381, %v1400
  %v1418 = vmul.f32 %v1382, %v1400
  %v1419 = vmul.f32 %v1383, %v1400
  %v1420 = vmul.f32 %v1384, %v1400
  %v1421 = vmul.f32 %v1385, %v1400
  %v1422 = vmul.f32 %v1386, %v1400
  %v1423 = vmul.f32 %v1387, %v1400
  %v1424 = vmul.f32 %v1388, %v1400
  %v1425 = vmul.f32 %v1389, %v1400
  %v1426 = vmul.f32 %v1390, %v1400
  %v1427 = vmul.f32 %v1391, %v1400
  %v1428 = vmul.f32 %v1392, %v1400
  %v1429 = vmul.f32 %v1393, %v1400
  %v1430 = vmul.f32 %v1394, %v1400
  %v1431 = vmul.f32 %v1395, %v1400
  %v1432 = vmul.f32 %v1396, %v1400
  %v1433 = vlaneseq
  %v1434 = vshrl.u32 %v1433, 7
  %v1435 = vsub.s32 0, %v1434
  %v1436 = vrot.slane %v19, %v1435
  %v1437 = vadd.f32 %v1401, %v1436
  %v1438 = vadd.f32 %v1402, %v1436
  %v1439 = vadd.f32 %v1403, %v1436
  %v1440 = vadd.f32 %v1404, %v1436
  %v1441 = vadd.f32 %v1405, %v1436
  %v1442 = vadd.f32 %v1406, %v1436
  %v1443 = vadd.f32 %v1407, %v1436
  %v1444 = vadd.f32 %v1408, %v1436
  %v1445 = vadd.f32 %v1409, %v1436
  %v1446 = vadd.f32 %v1410, %v1436
  %v1447 = vadd.f32 %v1411, %v1436
  %v1448 = vadd.f32 %v1412, %v1436
  %v1449 = vadd.f32 %v1413, %v1436
  %v1450 = vadd.f32 %v1414, %v1436
  %v1451 = vadd.f32 %v1415, %v1436
  %v1452 = vadd.f32 %v1416, %v1436
  %v1453 = vadd.f32 %v1417, %v1436
  %v1454 = vadd.f32 %v1418, %v1436
  %v1455 = vadd.f32 %v1419, %v1436
  %v1456 = vadd.f32 %v1420, %v1436
  %v1457 = vadd.f32 %v1421, %v1436
  %v1458 = vadd.f32 %v1422, %v1436
  %v1459 = vadd.f32 %v1423, %v1436
  %v1460 = vadd.f32 %v1424, %v1436
  %v1461 = vadd.f32 %v1425, %v1436
  %v1462 = vadd.f32 %v1426, %v1436
  %v1463 = vadd.f32 %v1427, %v1436
  %v1464 = vadd.f32 %v1428, %v1436
  %v1465 = vadd.f32 %v1429, %v1436
  %v1466 = vadd.f32 %v1430, %v1436
  %v1467 = vadd.f32 %v1431, %v1436
  %v1468 = vadd.f32 %v1432, %v1436
  %1501 = vrot.lane.b32.xlu0 %v1437, 64
  %v1502 = vpop.permute.xlu0 %1501
  %1503 = vrot.lane.b32.xlu0 %v1438, 64
  %v1504 = vpop.permute.xlu0 %1503
  %1505 = vrot.lane.b32.xlu0 %v1439, 64
  %v1506 = vpop.permute.xlu0 %1505
  %1507 = vrot.lane.b32.xlu0 %v1440, 64
  %v1508 = vpop.permute.xlu0 %1507
  %1509 = vrot.lane.b32.xlu0 %v1441, 64
  %v1510 = vpop.permute.xlu0 %1509
  %1511 = vrot.lane.b32.xlu0 %v1442, 64
  %v1512 = vpop.permute.xlu0 %1511
  %1513 = vrot.lane.b32.xlu0 %v1443, 64
  %v1514 = vpop.permute.xlu0 %1513
  %1515 = vrot.lane.b32.xlu0 %v1444, 64
  %v1516 = vpop.permute.xlu0 %1515
  %1517 = vrot.lane.b32.xlu0 %v1445, 64
  %v1518 = vpop.permute.xlu0 %1517
  %1519 = vrot.lane.b32.xlu0 %v1446, 64
  %v1520 = vpop.permute.xlu0 %1519
  %1521 = vrot.lane.b32.xlu0 %v1447, 64
  %v1522 = vpop.permute.xlu0 %1521
  %1523 = vrot.lane.b32.xlu0 %v1448, 64
  %v1524 = vpop.permute.xlu0 %1523
  %1525 = vrot.lane.b32.xlu0 %v1449, 64
  %v1526 = vpop.permute.xlu0 %1525
  %1527 = vrot.lane.b32.xlu0 %v1450, 64
  %v1528 = vpop.permute.xlu0 %1527
  %1529 = vrot.lane.b32.xlu0 %v1451, 64
  %v1530 = vpop.permute.xlu0 %1529
  %1531 = vrot.lane.b32.xlu0 %v1452, 64
  %v1532 = vpop.permute.xlu0 %1531
  %1533 = vrot.lane.b32.xlu0 %v1453, 64
  %v1534 = vpop.permute.xlu0 %1533
  %1535 = vrot.lane.b32.xlu0 %v1454, 64
  %v1536 = vpop.permute.xlu0 %1535
  %1537 = vrot.lane.b32.xlu0 %v1455, 64
  %v1538 = vpop.permute.xlu0 %1537
  %1539 = vrot.lane.b32.xlu0 %v1456, 64
  %v1540 = vpop.permute.xlu0 %1539
  %1541 = vrot.lane.b32.xlu0 %v1457, 64
  %v1542 = vpop.permute.xlu0 %1541
  %1543 = vrot.lane.b32.xlu0 %v1458, 64
  %v1544 = vpop.permute.xlu0 %1543
  %1545 = vrot.lane.b32.xlu0 %v1459, 64
  %v1546 = vpop.permute.xlu0 %1545
  %1547 = vrot.lane.b32.xlu0 %v1460, 64
  %v1548 = vpop.permute.xlu0 %1547
  %1549 = vrot.lane.b32.xlu0 %v1461, 64
  %v1550 = vpop.permute.xlu0 %1549
  %1551 = vrot.lane.b32.xlu0 %v1462, 64
  %v1552 = vpop.permute.xlu0 %1551
  %1553 = vrot.lane.b32.xlu0 %v1463, 64
  %v1554 = vpop.permute.xlu0 %1553
  %1555 = vrot.lane.b32.xlu0 %v1464, 64
  %v1556 = vpop.permute.xlu0 %1555
  %1557 = vrot.lane.b32.xlu0 %v1465, 64
  %v1558 = vpop.permute.xlu0 %1557
  %1559 = vrot.lane.b32.xlu0 %v1466, 64
  %v1560 = vpop.permute.xlu0 %1559
  %1561 = vrot.lane.b32.xlu0 %v1467, 64
  %v1562 = vpop.permute.xlu0 %1561
  %1563 = vrot.lane.b32.xlu0 %v1468, 64
  %v1564 = vpop.permute.xlu0 %1563
  %vm1597 = vcmask 523264
  %v1598 = vsel %vm1597, 0.0, %v1502
  %v1599 = vsel %vm1597, %v1437, %v1504
  %v1600 = vsel %vm1597, %v1438, %v1506
  %v1601 = vsel %vm1597, %v1439, %v1508
  %v1602 = vsel %vm1597, %v1440, %v1510
  %v1603 = vsel %vm1597, %v1441, %v1512
  %v1604 = vsel %vm1597, %v1442, %v1514
  %v1605 = vsel %vm1597, %v1443, %v1516
  %v1606 = vsel %vm1597, %v1444, %v1518
  %v1607 = vsel %vm1597, %v1445, %v1520
  %v1608 = vsel %vm1597, %v1446, %v1522
  %v1609 = vsel %vm1597, %v1447, %v1524
  %v1610 = vsel %vm1597, %v1448, %v1526
  %v1611 = vsel %vm1597, %v1449, %v1528
  %v1612 = vsel %vm1597, %v1450, %v1530
  %v1613 = vsel %vm1597, %v1451, %v1532
  %v1614 = vsel %vm1597, %v1452, %v1534
  %v1615 = vsel %vm1597, %v1453, %v1536
  %v1616 = vsel %vm1597, %v1454, %v1538
  %v1617 = vsel %vm1597, %v1455, %v1540
  %v1618 = vsel %vm1597, %v1456, %v1542
  %v1619 = vsel %vm1597, %v1457, %v1544
  %v1620 = vsel %vm1597, %v1458, %v1546
  %v1621 = vsel %vm1597, %v1459, %v1548
  %v1622 = vsel %vm1597, %v1460, %v1550
  %v1623 = vsel %vm1597, %v1461, %v1552
  %v1624 = vsel %vm1597, %v1462, %v1554
  %v1625 = vsel %vm1597, %v1463, %v1556
  %v1626 = vsel %vm1597, %v1464, %v1558
  %v1627 = vsel %vm1597, %v1465, %v1560
  %v1628 = vsel %vm1597, %v1466, %v1562
  %v1629 = vsel %vm1597, %v1467, %v1564
  %v1630 = vpack.c.bf16 %v1599, %v1598
  %v1631 = vpack.c.bf16 %v1439, %v1438
  %v1632 = vpack.c.bf16 %v1601, %v1600
  %v1633 = vpack.c.bf16 %v1441, %v1440
  %v1634 = vpack.c.bf16 %v1603, %v1602
  %v1635 = vpack.c.bf16 %v1443, %v1442
  %v1636 = vpack.c.bf16 %v1605, %v1604
  %v1637 = vpack.c.bf16 %v1445, %v1444
  %v1638 = vpack.c.bf16 %v1607, %v1606
  %v1639 = vpack.c.bf16 %v1447, %v1446
  %v1640 = vpack.c.bf16 %v1609, %v1608
  %v1641 = vpack.c.bf16 %v1449, %v1448
  %v1642 = vpack.c.bf16 %v1611, %v1610
  %v1643 = vpack.c.bf16 %v1451, %v1450
  %v1644 = vpack.c.bf16 %v1613, %v1612
  %v1645 = vpack.c.bf16 %v1453, %v1452
  %v1646 = vpack.c.bf16 %v1615, %v1614
  %v1647 = vpack.c.bf16 %v1455, %v1454
  %v1648 = vpack.c.bf16 %v1617, %v1616
  %v1649 = vpack.c.bf16 %v1457, %v1456
  %v1650 = vpack.c.bf16 %v1619, %v1618
  %v1651 = vpack.c.bf16 %v1459, %v1458
  %v1652 = vpack.c.bf16 %v1621, %v1620
  %v1653 = vpack.c.bf16 %v1461, %v1460
  %v1654 = vpack.c.bf16 %v1623, %v1622
  %v1655 = vpack.c.bf16 %v1463, %v1462
  %v1656 = vpack.c.bf16 %v1625, %v1624
  %v1657 = vpack.c.bf16 %v1465, %v1464
  %v1658 = vpack.c.bf16 %v1627, %v1626
  %v1659 = vpack.c.bf16 %v1467, %v1466
  %v1660 = vpack.c.bf16 %v1629, %v1628
  %v1661 = vpack.c.bf16 0.0, %v1468
  %v1662 = vld [vmem:[%s2] sm:$0xf]
  %v1663 = vld [vmem:[%s2 + $0x4] sm:$0xf]
  %v1664 = vld [vmem:[%s2 + $0x8] sm:$0xf]
  %v1665 = vld [vmem:[%s2 + $0xc] sm:$0xf]
  %v1666 = vld [vmem:[%s2 + $0x10] sm:$0xf]
  %v1667 = vld [vmem:[%s2 + $0x14] sm:$0xf]
  %v1668 = vld [vmem:[%s2 + $0x18] sm:$0xf]
  %v1669 = vld [vmem:[%s2 + $0x1c] sm:$0xf]
  %v1670 = vld [vmem:[%s2 + $0x20] sm:$0xf]
  %v1671 = vld [vmem:[%s2 + $0x24] sm:$0xf]
  %v1672 = vld [vmem:[%s2 + $0x28] sm:$0xf]
  %v1673 = vld [vmem:[%s2 + $0x2c] sm:$0xf]
  %v1674 = vld [vmem:[%s2 + $0x30] sm:$0xf]
  %v1675 = vld [vmem:[%s2 + $0x34] sm:$0xf]
  %v1676 = vld [vmem:[%s2 + $0x38] sm:$0xf]
  %v1677 = vld [vmem:[%s2 + $0x3c] sm:$0xf]
  %v1678 = vld [vmem:[%s2 + $0x40] sm:$0xf]
  %v1679 = vld [vmem:[%s2 + $0x44] sm:$0xf]
  %v1680 = vld [vmem:[%s2 + $0x48] sm:$0xf]
  %v1681 = vld [vmem:[%s2 + $0x4c] sm:$0xf]
  %v1682 = vld [vmem:[%s2 + $0x50] sm:$0xf]
  %v1683 = vld [vmem:[%s2 + $0x54] sm:$0xf]
  %v1684 = vld [vmem:[%s2 + $0x58] sm:$0xf]
  %v1685 = vld [vmem:[%s2 + $0x5c] sm:$0xf]
  %v1686 = vlaneseq
  %v1687 = vshrl.u32 %v1686, 7
  %v1688 = vsub.s32 1, %v1687
  %v1689 = vrot.slane %v19, %v1688
  %v1714 = vunpack.c.l.b16 %v1662
  %v1715 = vunpack.c.l.b16 %v1663
  %v1716 = vunpack.c.l.b16 %v1664
  %v1717 = vunpack.c.l.b16 %v1665
  %v1718 = vunpack.c.l.b16 %v1666
  %v1719 = vunpack.c.l.b16 %v1667
  %v1720 = vunpack.c.l.b16 %v1668
  %v1721 = vunpack.c.l.b16 %v1669
  %v1722 = vunpack.c.l.b16 %v1670
  %v1723 = vunpack.c.l.b16 %v1671
  %v1724 = vunpack.c.l.b16 %v1672
  %v1725 = vunpack.c.l.b16 %v1673
  %v1726 = vunpack.c.l.b16 %v1674
  %v1727 = vunpack.c.l.b16 %v1675
  %v1728 = vunpack.c.l.b16 %v1676
  %v1729 = vunpack.c.l.b16 %v1677
  %v1730 = vunpack.c.l.b16 %v1678
  %v1731 = vunpack.c.l.b16 %v1679
  %v1732 = vunpack.c.l.b16 %v1680
  %v1733 = vunpack.c.l.b16 %v1681
  %v1734 = vunpack.c.l.b16 %v1682
  %v1735 = vunpack.c.l.b16 %v1683
  %v1736 = vunpack.c.l.b16 %v1684
  %v1737 = vunpack.c.l.b16 %v1685
  %v1738 = vpack.c.b16 %v1715, %v1714
  %v1739 = vpack.c.b16 %v1717, %v1716
  %v1740 = vpack.c.b16 %v1719, %v1718
  %v1741 = vpack.c.b16 %v1721, %v1720
  %v1742 = vpack.c.b16 %v1723, %v1722
  %v1743 = vpack.c.b16 %v1725, %v1724
  %v1744 = vpack.c.b16 %v1727, %v1726
  %v1745 = vpack.c.b16 %v1729, %v1728
  %v1746 = vpack.c.b16 %v1731, %v1730
  %v1747 = vpack.c.b16 %v1733, %v1732
  %v1748 = vpack.c.b16 %v1735, %v1734
  %v1749 = vpack.c.b16 %v1737, %v1736
  %v1763 = vsel %vm1597, %v1631, 0
  %v1766 = vsel %vm1597, %v1633, 0
  %v1769 = vsel %vm1597, %v1635, 0
  %v1772 = vsel %vm1597, %v1637, 0
  %v1775 = vsel %vm1597, %v1639, 0
  %v1778 = vsel %vm1597, %v1641, 0
  %v1781 = vsel %vm1597, %v1643, 0
  %v1784 = vsel %vm1597, %v1645, 0
  %v1787 = vsel %vm1597, %v1647, 0
  %v1790 = vsel %vm1597, %v1649, 0
  %v1793 = vsel %vm1597, %v1651, 0
  %v1796 = vsel %vm1597, %v1653, 0
  %v1799 = vsel %vm1597, %v1655, 0
  %v1802 = vsel %vm1597, %v1657, 0
  %v1805 = vsel %vm1597, %v1659, 0
  %v1808 = vsel %vm1597, %v1661, 0
  %1810 = vmatprep.subr.bf16.mxu0 0
  %1811 = vmatpush1.bf16.msra.mxu0 %v1738
  %1812 = vmatprep.subr.bf16.mxu0 0
  %1813 = vmatpush1.bf16.msra.mxu0 %v1739
  %1814 = vmatprep.subr.bf16.mxu0 0
  %1815 = vmatpush1.bf16.msra.mxu0 %v1740
  %1816 = vmatprep.subr.bf16.mxu0 0
  %1817 = vmatpush1.bf16.msra.mxu0 %v1741
  %1818 = vmatprep.subr.bf16.mxu0 0
  %1819 = vmatpush1.bf16.msra.mxu0 %v1742
  %1820 = vmatprep.subr.bf16.mxu0 0
  %1821 = vmatpush1.bf16.msra.mxu0 %v1743
  %1822 = vmatprep.subr.bf16.mxu0 0
  %1823 = vmatpush1.bf16.msra.mxu0 %v1744
  %1824 = vmatprep.subr.bf16.mxu0 0
  %1825 = vmatpush1.bf16.msra.mxu0 %v1745
  %1826 = vmatprep.subr.bf16.mxu0 0
  %1827 = vmatpush1.bf16.msra.mxu0 %v1746
  %1828 = vmatprep.subr.bf16.mxu0 0
  %1829 = vmatpush1.bf16.msra.mxu0 %v1747
  %1830 = vmatprep.subr.bf16.mxu0 0
  %1831 = vmatpush1.bf16.msra.mxu0 %v1748
  %1832 = vmatprep.subr.bf16.mxu0 0
  %1833 = vmatpush1.bf16.msra.mxu0 %v1749
  %1834 = vmatprep.subr.bf16.mxu0 0
  %1835 = vmatpush1.bf16.msra.mxu0 0
  %1836 = vmatprep.subr.bf16.mxu0 0
  %1837 = vmatpush1.bf16.msra.mxu0 0
  %1838 = vmatprep.subr.bf16.mxu0 0
  %1839 = vmatpush1.bf16.msra.mxu0 0
  %1840 = vmatprep.subr.bf16.mxu0 0
  %1841 = vmatpush1.bf16.msra.mxu0 0
  %1842 = vmatprep.mubr.bf16.mxu0 %v1763
  %1843 = vmatmul.mubr.bf16.gmra.mrb[0].mxu0 %v1630
  %v1844 = vpop.f32.mrb[0].mxu0
  %v1845 = vadd.f32 %v1689, %v1844
  %v1846 = vpop.f32.mrb[0].mxu0
  %v1847 = vpop.f32.mrb[0].mxu0
  %v1848 = vadd.f32 %v1689, %v1847
  %v1849 = vpop.f32.mrb[0].mxu0
  %1850 = vmatprep.mubr.bf16.mxu0 %v1766
  %1851 = vmatmul.mubr.bf16.gmra.mrb[0].mxu0 %v1632
  %v1852 = vpop.f32.mrb[0].mxu0
  %v1853 = vadd.f32 %v1689, %v1852
  %v1854 = vpop.f32.mrb[0].mxu0
  %v1855 = vpop.f32.mrb[0].mxu0
  %v1856 = vadd.f32 %v1689, %v1855
  %v1857 = vpop.f32.mrb[0].mxu0
  %1858 = vmatprep.mubr.bf16.mxu0 %v1769
  %1859 = vmatmul.mubr.bf16.gmra.mrb[0].mxu0 %v1634
  %v1860 = vpop.f32.mrb[0].mxu0
  %v1861 = vadd.f32 %v1689, %v1860
  %v1862 = vpop.f32.mrb[0].mxu0
  %v1863 = vpop.f32.mrb[0].mxu0
  %v1864 = vadd.f32 %v1689, %v1863
  %v1865 = vpop.f32.mrb[0].mxu0
  %1866 = vmatprep.mubr.bf16.mxu0 %v1772
  %1867 = vmatmul.mubr.bf16.gmra.mrb[0].mxu0 %v1636
  %v1868 = vpop.f32.mrb[0].mxu0
  %v1869 = vadd.f32 %v1689, %v1868
  %v1870 = vpop.f32.mrb[0].mxu0
  %v1871 = vpop.f32.mrb[0].mxu0
  %v1872 = vadd.f32 %v1689, %v1871
  %v1873 = vpop.f32.mrb[0].mxu0
  %1874 = vmatprep.mubr.bf16.mxu0 %v1775
  %1875 = vmatmul.mubr.bf16.gmra.mrb[0].mxu0 %v1638
  %v1876 = vpop.f32.mrb[0].mxu0
  %v1877 = vadd.f32 %v1689, %v1876
  %v1878 = vpop.f32.mrb[0].mxu0
  %v1879 = vpop.f32.mrb[0].mxu0
  %v1880 = vadd.f32 %v1689, %v1879
  %v1881 = vpop.f32.mrb[0].mxu0
  %1882 = vmatprep.mubr.bf16.mxu0 %v1778
  %1883 = vmatmul.mubr.bf16.gmra.mrb[0].mxu0 %v1640
  %v1884 = vpop.f32.mrb[0].mxu0
  %v1885 = vadd.f32 %v1689, %v1884
  %v1886 = vpop.f32.mrb[0].mxu0
  %v1887 = vpop.f32.mrb[0].mxu0
  %v1888 = vadd.f32 %v1689, %v1887
  %v1889 = vpop.f32.mrb[0].mxu0
  %1890 = vmatprep.mubr.bf16.mxu0 %v1781
  %1891 = vmatmul.mubr.bf16.gmra.mrb[0].mxu0 %v1642
  %v1892 = vpop.f32.mrb[0].mxu0
  %v1893 = vadd.f32 %v1689, %v1892
  %v1894 = vpop.f32.mrb[0].mxu0
  %v1895 = vpop.f32.mrb[0].mxu0
  %v1896 = vadd.f32 %v1689, %v1895
  %v1897 = vpop.f32.mrb[0].mxu0
  %1898 = vmatprep.mubr.bf16.mxu0 %v1784
  %1899 = vmatmul.mubr.bf16.gmra.mrb[0].mxu0 %v1644
  %v1900 = vpop.f32.mrb[0].mxu0
  %v1901 = vadd.f32 %v1689, %v1900
  %v1902 = vpop.f32.mrb[0].mxu0
  %v1903 = vpop.f32.mrb[0].mxu0
  %v1904 = vadd.f32 %v1689, %v1903
  %v1905 = vpop.f32.mrb[0].mxu0
  %1906 = vmatprep.mubr.bf16.mxu0 %v1787
  %1907 = vmatmul.mubr.bf16.gmra.mrb[0].mxu0 %v1646
  %v1908 = vpop.f32.mrb[0].mxu0
  %v1909 = vadd.f32 %v1689, %v1908
  %v1910 = vpop.f32.mrb[0].mxu0
  %v1911 = vpop.f32.mrb[0].mxu0
  %v1912 = vadd.f32 %v1689, %v1911
  %v1913 = vpop.f32.mrb[0].mxu0
  %1914 = vmatprep.mubr.bf16.mxu0 %v1790
  %1915 = vmatmul.mubr.bf16.gmra.mrb[0].mxu0 %v1648
  %v1916 = vpop.f32.mrb[0].mxu0
  %v1917 = vadd.f32 %v1689, %v1916
  %v1918 = vpop.f32.mrb[0].mxu0
  %v1919 = vpop.f32.mrb[0].mxu0
  %v1920 = vadd.f32 %v1689, %v1919
  %v1921 = vpop.f32.mrb[0].mxu0
  %1922 = vmatprep.mubr.bf16.mxu0 %v1793
  %1923 = vmatmul.mubr.bf16.gmra.mrb[0].mxu0 %v1650
  %v1924 = vpop.f32.mrb[0].mxu0
  %v1925 = vadd.f32 %v1689, %v1924
  %v1926 = vpop.f32.mrb[0].mxu0
  %v1927 = vpop.f32.mrb[0].mxu0
  %v1928 = vadd.f32 %v1689, %v1927
  %v1929 = vpop.f32.mrb[0].mxu0
  %1930 = vmatprep.mubr.bf16.mxu0 %v1796
  %1931 = vmatmul.mubr.bf16.gmra.mrb[0].mxu0 %v1652
  %v1932 = vpop.f32.mrb[0].mxu0
  %v1933 = vadd.f32 %v1689, %v1932
  %v1934 = vpop.f32.mrb[0].mxu0
  %v1935 = vpop.f32.mrb[0].mxu0
  %v1936 = vadd.f32 %v1689, %v1935
  %v1937 = vpop.f32.mrb[0].mxu0
  %1938 = vmatprep.mubr.bf16.mxu0 %v1799
  %1939 = vmatmul.mubr.bf16.gmra.mrb[0].mxu0 %v1654
  %v1940 = vpop.f32.mrb[0].mxu0
  %v1941 = vadd.f32 %v1689, %v1940
  %v1942 = vpop.f32.mrb[0].mxu0
  %v1943 = vpop.f32.mrb[0].mxu0
  %v1944 = vadd.f32 %v1689, %v1943
  %v1945 = vpop.f32.mrb[0].mxu0
  %1946 = vmatprep.mubr.bf16.mxu0 %v1802
  %1947 = vmatmul.mubr.bf16.gmra.mrb[0].mxu0 %v1656
  %v1948 = vpop.f32.mrb[0].mxu0
  %v1949 = vadd.f32 %v1689, %v1948
  %v1950 = vpop.f32.mrb[0].mxu0
  %v1951 = vpop.f32.mrb[0].mxu0
  %v1952 = vadd.f32 %v1689, %v1951
  %v1953 = vpop.f32.mrb[0].mxu0
  %1954 = vmatprep.mubr.bf16.mxu0 %v1805
  %1955 = vmatmul.mubr.bf16.gmra.mrb[0].mxu0 %v1658
  %v1956 = vpop.f32.mrb[0].mxu0
  %v1957 = vadd.f32 %v1689, %v1956
  %v1958 = vpop.f32.mrb[0].mxu0
  %v1959 = vpop.f32.mrb[0].mxu0
  %v1960 = vadd.f32 %v1689, %v1959
  %v1961 = vpop.f32.mrb[0].mxu0
  %1962 = vmatprep.mubr.bf16.mxu0 %v1808
  %1963 = vmatmul.mubr.bf16.gmra.mrb[0].mxu0 %v1660
  %v1964 = vpop.f32.mrb[0].mxu0
  %v1965 = vadd.f32 %v1689, %v1964
  %v1966 = vpop.f32.mrb[0].mxu0
  %v1967 = vpop.f32.mrb[0].mxu0
  %v1968 = vadd.f32 %v1689, %v1967
  %v1969 = vpop.f32.mrb[0].mxu0
  %1970 = vdwg.mxu0
  %v1971 = vmax.f32 %v1845, 0.0
  %v1972 = vmax.f32 %v1848, 0.0
  %v1973 = vmax.f32 %v1853, 0.0
  %v1974 = vmax.f32 %v1856, 0.0
  %v1975 = vmax.f32 %v1861, 0.0
  %v1976 = vmax.f32 %v1864, 0.0
  %v1977 = vmax.f32 %v1869, 0.0
  %v1978 = vmax.f32 %v1872, 0.0
  %v1979 = vmax.f32 %v1877, 0.0
  %v1980 = vmax.f32 %v1880, 0.0
  %v1981 = vmax.f32 %v1885, 0.0
  %v1982 = vmax.f32 %v1888, 0.0
  %v1983 = vmax.f32 %v1893, 0.0
  %v1984 = vmax.f32 %v1896, 0.0
  %v1985 = vmax.f32 %v1901, 0.0
  %v1986 = vmax.f32 %v1904, 0.0
  %v1987 = vmax.f32 %v1909, 0.0
  %v1988 = vmax.f32 %v1912, 0.0
  %v1989 = vmax.f32 %v1917, 0.0
  %v1990 = vmax.f32 %v1920, 0.0
  %v1991 = vmax.f32 %v1925, 0.0
  %v1992 = vmax.f32 %v1928, 0.0
  %v1993 = vmax.f32 %v1933, 0.0
  %v1994 = vmax.f32 %v1936, 0.0
  %v1995 = vmax.f32 %v1941, 0.0
  %v1996 = vmax.f32 %v1944, 0.0
  %v1997 = vmax.f32 %v1949, 0.0
  %v1998 = vmax.f32 %v1952, 0.0
  %v1999 = vmax.f32 %v1957, 0.0
  %v2000 = vmax.f32 %v1960, 0.0
  %v2001 = vmax.f32 %v1965, 0.0
  %v2002 = vmax.f32 %v1968, 0.0
  %v2003 = vadd.f32 %v1971, %v1972
  %v2004 = vadd.f32 %v2003, %v1973
  %v2005 = vadd.f32 %v2004, %v1974
  %v2006 = vadd.f32 %v2005, %v1975
  %v2007 = vadd.f32 %v2006, %v1976
  %v2008 = vadd.f32 %v2007, %v1977
  %v2009 = vadd.f32 %v2008, %v1978
  %v2010 = vadd.f32 %v2009, %v1979
  %v2011 = vadd.f32 %v2010, %v1980
  %v2012 = vadd.f32 %v2011, %v1981
  %v2013 = vadd.f32 %v2012, %v1982
  %v2014 = vadd.f32 %v2013, %v1983
  %v2015 = vadd.f32 %v2014, %v1984
  %v2016 = vadd.f32 %v2015, %v1985
  %v2017 = vadd.f32 %v2016, %v1986
  %v2018 = vadd.f32 %v2017, %v1987
  %v2019 = vadd.f32 %v2018, %v1988
  %v2020 = vadd.f32 %v2019, %v1989
  %v2021 = vadd.f32 %v2020, %v1990
  %v2022 = vadd.f32 %v2021, %v1991
  %v2023 = vadd.f32 %v2022, %v1992
  %v2024 = vadd.f32 %v2023, %v1993
  %v2025 = vadd.f32 %v2024, %v1994
  %v2026 = vadd.f32 %v2025, %v1995
  %v2027 = vadd.f32 %v2026, %v1996
  %v2028 = vadd.f32 %v2027, %v1997
  %v2029 = vadd.f32 %v2028, %v1998
  %v2030 = vadd.f32 %v2029, %v1999
  %v2031 = vadd.f32 %v2030, %v2000
  %v2032 = vadd.f32 %v2031, %v2001
  %v2033 = vadd.f32 %v2032, %v2002
  %v2034 = vmul.f32 %v2033, 0.03125
  %v2035 = vld [vmem:[%s3] sm:$0xff]
  %v2036 = vld [vmem:[%s3 + $0x8] sm:$0xff]
  %v2037 = vld [vmem:[%s3 + $0x10] sm:$0xff]
  %v2038 = vld [vmem:[%s3 + $0x18] sm:$0xff]
  %v2039 = vld [vmem:[%s3 + $0x20] sm:$0xff]
  %v2040 = vld [vmem:[%s3 + $0x28] sm:$0xff]
  %v2041 = vld [vmem:[%s3 + $0x30] sm:$0xff]
  %v2042 = vld [vmem:[%s3 + $0x38] sm:$0xff]
  %v2043 = vld [vmem:[%s3 + $0x40] sm:$0xff]
  %v2044 = vld [vmem:[%s3 + $0x48] sm:$0xff]
  %v2045 = vld [vmem:[%s3 + $0x50] sm:$0xff]
  %v2046 = vld [vmem:[%s3 + $0x58] sm:$0xff]
  %v2047 = vld [vmem:[%s3 + $0x60] sm:$0xff]
  %v2048 = vld [vmem:[%s3 + $0x68] sm:$0xff]
  %v2049 = vld [vmem:[%s3 + $0x70] sm:$0xff]
  %v2050 = vld [vmem:[%s3 + $0x78] sm:$0xff]
  %v2051 = vlaneseq
  %v2052 = vshrl.u32 %v2051, 7
  %v2053 = vsub.s32 2, %v2052
  %v2054 = vrot.slane %v19, %v2053
  %2055 = vmatprep.subr.mxu0 0.0
  %2056 = vmatpush1.msra.mxu0 %v2035
  %2057 = vmatprep.subr.mxu0 0.0
  %2058 = vmatpush1.msra.mxu0 %v2036
  %2059 = vmatprep.subr.mxu0 0.0
  %2060 = vmatpush1.msra.mxu0 %v2037
  %2061 = vmatprep.subr.mxu0 0.0
  %2062 = vmatpush1.msra.mxu0 %v2038
  %2063 = vmatprep.subr.mxu0 0.0
  %2064 = vmatpush1.msra.mxu0 %v2039
  %2065 = vmatprep.subr.mxu0 0.0
  %2066 = vmatpush1.msra.mxu0 %v2040
  %2067 = vmatprep.subr.mxu0 0.0
  %2068 = vmatpush1.msra.mxu0 %v2041
  %2069 = vmatprep.subr.mxu0 0.0
  %2070 = vmatpush1.msra.mxu0 %v2042
  %2071 = vmatprep.subr.mxu0 0.0
  %2072 = vmatpush1.msra.mxu0 %v2043
  %2073 = vmatprep.subr.mxu0 0.0
  %2074 = vmatpush1.msra.mxu0 %v2044
  %2075 = vmatprep.subr.mxu0 0.0
  %2076 = vmatpush1.msra.mxu0 %v2045
  %2077 = vmatprep.subr.mxu0 0.0
  %2078 = vmatpush1.msra.mxu0 %v2046
  %2079 = vmatprep.subr.mxu0 0.0
  %2080 = vmatpush1.msra.mxu0 %v2047
  %2081 = vmatprep.subr.mxu0 0.0
  %2082 = vmatpush1.msra.mxu0 %v2048
  %2083 = vmatprep.subr.mxu0 0.0
  %2084 = vmatpush1.msra.mxu0 %v2049
  %2085 = vmatprep.subr.mxu0 0.0
  %2086 = vmatpush1.msra.mxu0 %v2050
  %2087 = vmatprep.subr.mxu0 0.0
  %2088 = vmatpush1.msra.mxu0 0.0
  %2089 = vmatprep.subr.mxu0 0.0
  %2090 = vmatpush1.msra.mxu0 0.0
  %2091 = vmatprep.subr.mxu0 0.0
  %2092 = vmatpush1.msra.mxu0 0.0
  %2093 = vmatprep.subr.mxu0 0.0
  %2094 = vmatpush1.msra.mxu0 0.0
  %2095 = vmatprep.subr.mxu0 0.0
  %2096 = vmatpush1.msra.mxu0 0.0
  %2097 = vmatprep.subr.mxu0 0.0
  %2098 = vmatpush1.msra.mxu0 0.0
  %2099 = vmatprep.subr.mxu0 0.0
  %2100 = vmatpush1.msra.mxu0 0.0
  %2101 = vmatprep.subr.mxu0 0.0
  %2102 = vmatpush1.msra.mxu0 0.0
  %2103 = vmatprep.subr.mxu0 0.0
  %2104 = vmatpush1.msra.mxu0 0.0
  %2105 = vmatprep.subr.mxu0 0.0
  %2106 = vmatpush1.msra.mxu0 0.0
  %2107 = vmatprep.subr.mxu0 0.0
  %2108 = vmatpush1.msra.mxu0 0.0
  %2109 = vmatprep.subr.mxu0 0.0
  %2110 = vmatpush1.msra.mxu0 0.0
  %2111 = vmatprep.subr.mxu0 0.0
  %2112 = vmatpush1.msra.mxu0 0.0
  %2113 = vmatprep.subr.mxu0 0.0
  %2114 = vmatpush1.msra.mxu0 0.0
  %2115 = vmatprep.subr.mxu0 0.0
  %2116 = vmatpush1.msra.mxu0 0.0
  %2117 = vmatprep.subr.mxu0 0.0
  %2118 = vmatpush1.msra.mxu0 0.0
  %2119 = vmatprep.mubr.f32.mxu0 0.0
  %2120 = vmatmul.mubr.f32.gmra.mrb[0].mxu0 %v2034
  %v2121 = vpop.f32.mrb[0].mxu0
  %v2122 = vadd.f32 %v2054, %v2121
  %v2123 = vpop.f32.mrb[0].mxu0
  %2124 = vdwg.mxu0
  %v2125 = vmax.f32 %v2122, 0.0
  %v2126 = vlaneseq
  %v2127 = vshrl.u32 %v2126, 7
  %v2128 = vsub.s32 3, %v2127
  %v2129 = vrot.slane %v19, %v2128
  %v2130 = vmul.f32 %v2125, %v2129
  %v2131 = vsel %vm1597, %v2130, 0.0
  %2132 = vadd.xlane.f32.xlu0 %v2131
  %v2133 = vpop.xlane.xlu0 %2132
  %v2134 = vlaneseq
  %v2135 = vshrl.u32 %v2134, 7
  %v2136 = vsub.s32 4, %v2135
  %v2137 = vrot.slane %v19, %v2136
  %v2138 = vadd.f32 %v2133, %v2137
  %v2139 = vsub.f32 0.0, %v2138
  %v2140 = vmul.f32 %v2139, 1.442695
  %v2141 = vpow.pop %v2140
  %v2142 = vadd.f32 %v2141, 1.0
  %v2143 = vrcp.pop %v2142
  %v2144 = vmul.f32 1.0, %v2143
  %vm2145 = vcmask 7168
  %2146 = vst.msk [vmem:[%s4] sm:$0xff] %vm2145, %v2144
  // Predicated region
  $region18: #{deephage_forward.1} parent=0 // pred_check
    _
  $region19: #{deephage_forward.1} parent=0 // pred_check_branch
    %2148 = sbr.rel (0) target = $region21
  $region20: #{deephage_forward.1} parent=0 // pred_region
    _
  $region21: #{deephage_forward.1} parent=0 // pred_fallthru
    _
  // Predicated region
  $region22: #{deephage_forward.1} parent=0 // pred_check
    _
  $region23: #{deephage_forward.1} parent=0 // pred_check_branch
    %2150 = sbr.rel (0) target = $region25
  $region24: #{deephage_forward.1} parent=0 // pred_region
    _
  $region25: #{deephage_forward.1} parent=0 // pred_fallthru
    _

</llo_original>
